<compile_context>
chip_gen: v5e
topology: v5e:2x2
jax: 0.10.0
libtpu: 0.0.40
codegen_flags: <defaults>
</compile_context>

<pallas_src>
import numpy as np
import jax
import jax.numpy as jnp
from jax.experimental import pallas as pl


def _make_encode_kernel(N, H, K, Cout, n_layers):
    """Builds the fused kernel body for static geometry."""
    heights = [H]
    for _ in range(n_layers):
        heights.append((heights[-1] - K + 1) // 2)

    def kernel(xt_ref, w1_ref, w2_ref, w3_ref, gb_ref,
               sel1_ref, sel2_ref, sel3_ref,
               out_ref, idx1_ref, idx2_ref, idx3_ref):
        w_refs = (w1_ref, w2_ref, w3_ref)
        sel_refs = (sel1_ref, sel2_ref, sel3_ref)
        idx_refs = (idx1_ref, idx2_ref, idx3_ref)

        xt = xt_ref[...]                                  # (Cin, N*H) channel-major
        for l in range(n_layers):
            Hin = heights[l]
            Ho = Hin - K + 1                              # conv output height
            Hp = Ho // 2                                  # pooled height
            L = N * Hin - K + 1                           # conv positions (incl. boundary junk)

            # ---- Conv2d (valid, stride 1, bias=False): K matmuls on the MXU,
            # batch folded into the lane (position) axis. ----
            w_ref = w_refs[l]
            acc = jnp.dot(w_ref[0], xt[:, 0:L],
                          preferred_element_type=jnp.float32)
            for kh in range(1, K):
                acc = acc + jnp.dot(w_ref[kh], xt[:, kh:kh + L],
                                    preferred_element_type=jnp.float32)

            # Positions whose window crosses a batch boundary are junk:
            # exclude them from the BN statistics (they are never pooled).
            pos = jax.lax.broadcasted_iota(jnp.int32, (1, L), 1)
            valid = jnp.zeros((1, L), jnp.float32)
            for n in range(N):
                seg = jnp.logical_and(pos >= n * Hin, pos < n * Hin + Ho)
                valid = jnp.maximum(valid, seg.astype(jnp.float32))

            # ---- BatchNorm2d (training-mode batch stats, biased variance,
            # eps=1e-3 as in BasicConv2d) folded into one FMA, then ReLU. ----
            cnt = N * Ho
            mean = jnp.sum(acc * valid, axis=1, keepdims=True) / cnt       # (Cout,1)
            var = jnp.sum(jnp.square(acc - mean) * valid, axis=1,
                          keepdims=True) / cnt                             # (Cout,1)
            gamma = gb_ref[:, 2 * l:2 * l + 1]                             # (Cout,1)
            beta = gb_ref[:, 2 * l + 1:2 * l + 2]                          # (Cout,1)
            scale = gamma * jax.lax.rsqrt(var + 1e-3)
            shift = beta - mean * scale
            y = jnp.maximum(acc * scale + shift, 0.0)                      # (Cout, L)

            # ---- MaxPool2d((2,1), 2, return_indices=True): gather the even /
            # odd rows of every pooling window with ONE constant 0/1 selector
            # matmul (no strided sublane access, no scratch round-trip). ----
            ab = jnp.dot(y, sel_refs[l][...],
                         preferred_element_type=jnp.float32)               # (Cout, 2*N*Hp)
            a = ab[:, :N * Hp]                                             # even rows
            b = ab[:, N * Hp:]                                             # odd rows
            pooled = jnp.maximum(a, b)                                     # (Cout, N*Hp)
            gt = (b > a).astype(jnp.int32)                                 # ties -> even row

            base = 2 * jax.lax.broadcasted_iota(jnp.int32, (Cout, Hp), 1)
            for n in range(N):
                idx_refs[l][n] = base + gt[:, n * Hp:(n + 1) * Hp]
                if l == n_layers - 1:
                    out_ref[n] = pooled[:, n * Hp:(n + 1) * Hp]

            xt = pooled                        # already channel-major for the next layer

    return kernel


def _pool_selector(N, Hin, K):
    """Constant 0/1 matrix S (L, 2*N*Hp): y(C,L) @ S = [even rows | odd rows]
    of every (2,1) pooling window; batch-boundary junk columns never selected."""
    Ho = Hin - K + 1
    Hp = Ho // 2
    L = N * Hin - K + 1
    sel = np.zeros((L, 2 * N * Hp), np.float32)
    for n in range(N):
        for j in range(Hp):
            sel[n * Hin + 2 * j, n * Hp + j] = 1.0               # even row
            sel[n * Hin + 2 * j + 1, N * Hp + n * Hp + j] = 1.0  # odd row
    return jnp.asarray(sel)


def encode_fused(xt, weights, gb, sels, *, N, H, K):
    """xt: (Cin, N*H) channel-major input.  Returns (out, idx1, idx2, idx3):
    out (N, Cout, Hp3) f32 and idx_l (N, Cout, Hp_l) int32."""
    assert len(weights) == 3 and len(sels) == 3
    n_layers = len(weights)
    Cout = weights[0].shape[1]
    heights = [H]
    for _ in range(n_layers):
        heights.append((heights[-1] - K + 1) // 2)
    hp = heights[1:]

    kernel = _make_encode_kernel(N, H, K, Cout, n_layers)
    out_shape = (
        jax.ShapeDtypeStruct((N, Cout, hp[-1]), jnp.float32),
        jax.ShapeDtypeStruct((N, Cout, hp[0]), jnp.int32),
        jax.ShapeDtypeStruct((N, Cout, hp[1]), jnp.int32),
        jax.ShapeDtypeStruct((N, Cout, hp[2]), jnp.int32),
    )
    # Grid-less call: whole arrays (a few tens of KB) live in VMEM for the
    # single fused invocation.
    return pl.pallas_call(kernel, out_shape=out_shape)(
        xt, weights[0], weights[1], weights[2], gb, sels[0], sels[1], sels[2])


def kaiming_uniform(key, shape):
    # nn.init.kaiming_uniform (a=0): bound = sqrt(6 / fan_in), fan_in = prod(shape[1:])
    fan_in = 1
    for s in shape[1:]:
        fan_in *= s
    bound = (6.0 / fan_in) ** 0.5
    return jax.random.uniform(key, shape, jnp.float32, -bound, bound)


def init_encode_params(key, size):
    k1, k2, k3 = jax.random.split(key, 3)
    # PyTorch conv weight layouts: conv1 (16, 1, 5, size); conv2/3 (16, 16, 5, 1)
    w1 = kaiming_uniform(k1, (16, 1, 5, size))
    w2 = kaiming_uniform(k2, (16, 16, 5, 1))
    w3 = kaiming_uniform(k3, (16, 16, 5, 1))
    # repack to the kernel's channel-major layout (K, Cout, Cin_or_W)
    w1k = jnp.transpose(w1[:, 0, :, :], (1, 0, 2))        # (5, 16, size)
    w2k = jnp.transpose(w2[:, :, :, 0], (2, 0, 1))        # (5, 16, 16)
    w3k = jnp.transpose(w3[:, :, :, 0], (2, 0, 1))        # (5, 16, 16)
    gamma = jnp.ones((16,), jnp.float32)
    beta = jnp.zeros((16,), jnp.float32)
    return [(w1k, gamma, beta), (w2k, gamma, beta), (w3k, gamma, beta)]


def encode_forward(x_nchw, params):
    """Mirrors Encode.forward: returns (x, indices, sizes).

    x_nchw: (N, 1, H, W) float32.  Pooled output and max-pool indices are in
    PyTorch's NCHW convention (N, 16, H', 1); `sizes` are the NCHW shapes of
    each conv output (the max-pool inputs).  Indices are int32.
    # TODO(synk): cast indices to int64 if a downstream MaxUnpool needs it.
    """
    N, Cin, H, W = x_nchw.shape
    assert Cin == 1
    weights = [p[0] for p in params]
    K = weights[0].shape[0]
    Cout = weights[0].shape[1]
    assert weights[0].shape[2] == W, "conv1 kernel width must equal input width"

    # gamma/beta packed as one (Cout, 6) input: col 2l = gamma_l, 2l+1 = beta_l.
    gb = jnp.stack([c for p in params for c in (p[1], p[2])], axis=1)

    heights, sizes, sels = [H], [], []
    for _ in params:
        Hin = heights[-1]
        Ho = Hin - K + 1
        sizes.append((N, Cout, Ho, 1))           # NCHW size of the pre-pool conv output
        sels.append(_pool_selector(N, Hin, K))
        heights.append(Ho // 2)

    # (N,1,H,W) -> channel-major (W, N*H): width is the layer-1 reduction axis.
    xt = jnp.transpose(x_nchw[:, 0, :, :], (2, 0, 1)).reshape(W, N * H)

    out, idx1, idx2, idx3 = encode_fused(xt, weights, gb, sels, N=N, H=H, K=K)
    x_out = out[..., None]                                    # (N, 16, Hp3, 1)
    indices = [idx1[..., None], idx2[..., None], idx3[..., None]]
    return x_out, indices, sizes


def _encode_reference(x_nchw, params, eps=1e-3):
    """Pure-JAX reference of Encode.forward (same packed-weight convention)."""
    N, _, H, W = x_nchw.shape
    h = jnp.transpose(x_nchw[:, 0, :, :], (0, 2, 1))          # (N, Cin=W, H)
    indices = []
    pooled = None
    for (wk, gamma, beta) in params:
        K, Cout, _ = wk.shape
        Ho = h.shape[2] - K + 1
        conv = jnp.zeros((N, Cout, Ho), jnp.float32)
        for kh in range(K):
            conv = conv + jnp.einsum('oc,nch->noh', wk[kh], h[:, :, kh:kh + Ho])
        mean = jnp.mean(conv, axis=(0, 2), keepdims=True)
        var = jnp.mean(jnp.square(conv - mean), axis=(0, 2), keepdims=True)
        y = (conv - mean) * jax.lax.rsqrt(var + eps)
        y = y * gamma[None, :, None] + beta[None, :, None]
        y = jnp.maximum(y, 0.0)
        Hp = Ho // 2
        a = y[:, :, 0:2 * Hp:2]
        b = y[:, :, 1:2 * Hp:2]
        pooled = jnp.maximum(a, b)
        idx = (2 * jnp.arange(Hp, dtype=jnp.int32)[None, None, :]
               + (b > a).astype(jnp.int32))
        indices.append(idx[..., None])
        h = pooled
    return pooled[..., None], indices


if __name__ == "__main__":
    key = jax.random.PRNGKey(0)
    kx, kp = jax.random.split(key)

    N, H, W = 2, 48, 16                      # size == W == 16
    x = jax.random.normal(kx, (N, 1, H, W), jnp.float32)
    params = init_encode_params(kp, W)

    out, indices, sizes = encode_forward(x, params)
    out = jax.block_until_ready(out)
    for idx in indices:
        jax.block_until_ready(idx)

    assert out.shape == (N, 16, 2, 1)
    assert sizes == [(N, 16, 44, 1), (N, 16, 18, 1), (N, 16, 5, 1)]
    assert [i.shape for i in indices] == [(N, 16, 22, 1), (N, 16, 9, 1), (N, 16, 2, 1)]

    # Numerical sanity check vs a pure-JAX reference.  Tolerances are loose
    # because MXU matmul rounding differs between the Pallas and XLA paths;
    # near-tie pool indices may legitimately flip under that rounding.
    ref_out, ref_idx = _encode_reference(x, params)
    assert bool(jnp.allclose(out, ref_out, rtol=1e-1, atol=1e-1))
    agree = sum(int(jnp.sum(a == b)) for a, b in zip(indices, ref_idx))
    total = sum(a.size for a in indices)
    assert agree / total > 0.95

    print("KERNEL_OK")
</pallas_src>

<mosaic_0001>
module attributes {stable_mosaic.version = 11 : i64} {
  func.func @kernel(%arg0: memref<16x96xf32, #tpu.memory_space<vmem>>, %arg1: memref<5x16x16xf32, #tpu.memory_space<vmem>>, %arg2: memref<5x16x16xf32, #tpu.memory_space<vmem>>, %arg3: memref<5x16x16xf32, #tpu.memory_space<vmem>>, %arg4: memref<16x6xf32, #tpu.memory_space<vmem>>, %arg5: memref<92x88xf32, #tpu.memory_space<vmem>>, %arg6: memref<40x36xf32, #tpu.memory_space<vmem>>, %arg7: memref<14x8xf32, #tpu.memory_space<vmem>>, %arg8: memref<2x16x2xf32, #tpu.memory_space<vmem>>, %arg9: memref<2x16x22xi32, #tpu.memory_space<vmem>>, %arg10: memref<2x16x9xi32, #tpu.memory_space<vmem>>, %arg11: memref<2x16x2xi32, #tpu.memory_space<vmem>>) attributes {dimension_semantics = [], scalar_prefetch = 0 : i64, scratch_operands = 0 : i64, tpu.core_type = #tpu.core_type<tc>} {
    %c0 = arith.constant 0 : index
    %c0_0 = arith.constant 0 : index
    %0 = vector.load %arg0[%c0, %c0_0] : memref<16x96xf32, #tpu.memory_space<vmem>>, vector<16x96xf32>
    %c0_1 = arith.constant 0 : index
    %c0_2 = arith.constant 0 : index
    %c0_3 = arith.constant 0 : index
    %1 = vector.load %arg1[%c0_1, %c0_2, %c0_3] : memref<5x16x16xf32, #tpu.memory_space<vmem>>, vector<1x16x16xf32>
    %2 = vector.shape_cast %1 : vector<1x16x16xf32> to vector<16x16xf32>
    %3 = vector.extract_strided_slice %0 {offsets = [0, 0], sizes = [16, 92], strides = [1, 1]} : vector<16x96xf32> to vector<16x92xf32>
    %cst = arith.constant dense<0.000000e+00> : vector<16x92xf32>
    %4 = tpu.matmul %2, %3, %cst {dimension_numbers = #tpu.dot_dimension_numbers<[1], [0], [0], [1], [0, 0, 1, 1], [], []>} : vector<16x16xf32>, vector<16x92xf32>, vector<16x92xf32> -> vector<16x92xf32>
    %c1 = arith.constant 1 : index
    %c0_4 = arith.constant 0 : index
    %c0_5 = arith.constant 0 : index
    %5 = vector.load %arg1[%c1, %c0_4, %c0_5] : memref<5x16x16xf32, #tpu.memory_space<vmem>>, vector<1x16x16xf32>
    %6 = vector.shape_cast %5 : vector<1x16x16xf32> to vector<16x16xf32>
    %7 = vector.extract_strided_slice %0 {offsets = [0, 1], sizes = [16, 92], strides = [1, 1]} : vector<16x96xf32> to vector<16x92xf32>
    %cst_6 = arith.constant dense<0.000000e+00> : vector<16x92xf32>
    %8 = tpu.matmul %6, %7, %cst_6 {dimension_numbers = #tpu.dot_dimension_numbers<[1], [0], [0], [1], [0, 0, 1, 1], [], []>} : vector<16x16xf32>, vector<16x92xf32>, vector<16x92xf32> -> vector<16x92xf32>
    %9 = arith.addf %4, %8 : vector<16x92xf32>
    %c2 = arith.constant 2 : index
    %c0_7 = arith.constant 0 : index
    %c0_8 = arith.constant 0 : index
    %10 = vector.load %arg1[%c2, %c0_7, %c0_8] : memref<5x16x16xf32, #tpu.memory_space<vmem>>, vector<1x16x16xf32>
    %11 = vector.shape_cast %10 : vector<1x16x16xf32> to vector<16x16xf32>
    %12 = vector.extract_strided_slice %0 {offsets = [0, 2], sizes = [16, 92], strides = [1, 1]} : vector<16x96xf32> to vector<16x92xf32>
    %cst_9 = arith.constant dense<0.000000e+00> : vector<16x92xf32>
    %13 = tpu.matmul %11, %12, %cst_9 {dimension_numbers = #tpu.dot_dimension_numbers<[1], [0], [0], [1], [0, 0, 1, 1], [], []>} : vector<16x16xf32>, vector<16x92xf32>, vector<16x92xf32> -> vector<16x92xf32>
    %14 = arith.addf %9, %13 : vector<16x92xf32>
    %c3 = arith.constant 3 : index
    %c0_10 = arith.constant 0 : index
    %c0_11 = arith.constant 0 : index
    %15 = vector.load %arg1[%c3, %c0_10, %c0_11] : memref<5x16x16xf32, #tpu.memory_space<vmem>>, vector<1x16x16xf32>
    %16 = vector.shape_cast %15 : vector<1x16x16xf32> to vector<16x16xf32>
    %17 = vector.extract_strided_slice %0 {offsets = [0, 3], sizes = [16, 92], strides = [1, 1]} : vector<16x96xf32> to vector<16x92xf32>
    %cst_12 = arith.constant dense<0.000000e+00> : vector<16x92xf32>
    %18 = tpu.matmul %16, %17, %cst_12 {dimension_numbers = #tpu.dot_dimension_numbers<[1], [0], [0], [1], [0, 0, 1, 1], [], []>} : vector<16x16xf32>, vector<16x92xf32>, vector<16x92xf32> -> vector<16x92xf32>
    %19 = arith.addf %14, %18 : vector<16x92xf32>
    %c4 = arith.constant 4 : index
    %c0_13 = arith.constant 0 : index
    %c0_14 = arith.constant 0 : index
    %20 = vector.load %arg1[%c4, %c0_13, %c0_14] : memref<5x16x16xf32, #tpu.memory_space<vmem>>, vector<1x16x16xf32>
    %21 = vector.shape_cast %20 : vector<1x16x16xf32> to vector<16x16xf32>
    %22 = vector.extract_strided_slice %0 {offsets = [0, 4], sizes = [16, 92], strides = [1, 1]} : vector<16x96xf32> to vector<16x92xf32>
    %cst_15 = arith.constant dense<0.000000e+00> : vector<16x92xf32>
    %23 = tpu.matmul %21, %22, %cst_15 {dimension_numbers = #tpu.dot_dimension_numbers<[1], [0], [0], [1], [0, 0, 1, 1], [], []>} : vector<16x16xf32>, vector<16x92xf32>, vector<16x92xf32> -> vector<16x92xf32>
    %24 = arith.addf %19, %23 : vector<16x92xf32>
    %25 = tpu.iota {dimensions = array<i32: 1>} : vector<1x92xi32>
    %cst_16 = arith.constant 0.000000e+00 : f32
    %26 = vector.broadcast %cst_16 : f32 to vector<1x92xf32>
    %c0_i32 = arith.constant 0 : i32
    %27 = vector.broadcast %c0_i32 : i32 to vector<1x92xi32>
    %28 = arith.cmpi sge, %25, %27 : vector<1x92xi32>
    %c44_i32 = arith.constant 44 : i32
    %29 = vector.broadcast %c44_i32 : i32 to vector<1x92xi32>
    %30 = arith.cmpi slt, %25, %29 : vector<1x92xi32>
    %31 = arith.andi %28, %30 : vector<1x92xi1>
    %32 = arith.extui %31 : vector<1x92xi1> to vector<1x92xi32>
    %33 = arith.sitofp %32 : vector<1x92xi32> to vector<1x92xf32>
    %34 = arith.maximumf %26, %33 : vector<1x92xf32>
    %c48_i32 = arith.constant 48 : i32
    %35 = vector.broadcast %c48_i32 : i32 to vector<1x92xi32>
    %36 = arith.cmpi sge, %25, %35 : vector<1x92xi32>
    %c92_i32 = arith.constant 92 : i32
    %37 = vector.broadcast %c92_i32 : i32 to vector<1x92xi32>
    %38 = arith.cmpi slt, %25, %37 : vector<1x92xi32>
    %39 = arith.andi %36, %38 : vector<1x92xi1>
    %40 = arith.extui %39 : vector<1x92xi1> to vector<1x92xi32>
    %41 = arith.sitofp %40 : vector<1x92xi32> to vector<1x92xf32>
    %42 = arith.maximumf %34, %41 : vector<1x92xf32>
    %43 = vector.broadcast %42 : vector<1x92xf32> to vector<16x92xf32>
    %44 = arith.mulf %24, %43 : vector<16x92xf32>
    %cst_17 = arith.constant dense<0.000000e+00> : vector<16xf32>
    %45 = vector.multi_reduction <add>, %44, %cst_17 [1] : vector<16x92xf32> to vector<16xf32>
    %46 = vector.shape_cast %45 : vector<16xf32> to vector<16x1xf32>
    %cst_18 = arith.constant 8.800000e+01 : f32
    %47 = vector.broadcast %cst_18 : f32 to vector<16x1xf32>
    %48 = arith.divf %46, %47 : vector<16x1xf32>
    %49 = vector.broadcast %48 : vector<16x1xf32> to vector<16x92xf32>
    %50 = arith.subf %24, %49 : vector<16x92xf32>
    %51 = arith.mulf %50, %50 : vector<16x92xf32>
    %52 = vector.broadcast %42 : vector<1x92xf32> to vector<16x92xf32>
    %53 = arith.mulf %51, %52 : vector<16x92xf32>
    %cst_19 = arith.constant dense<0.000000e+00> : vector<16xf32>
    %54 = vector.multi_reduction <add>, %53, %cst_19 [1] : vector<16x92xf32> to vector<16xf32>
    %55 = vector.shape_cast %54 : vector<16xf32> to vector<16x1xf32>
    %cst_20 = arith.constant 8.800000e+01 : f32
    %56 = vector.broadcast %cst_20 : f32 to vector<16x1xf32>
    %57 = arith.divf %55, %56 : vector<16x1xf32>
    %c0_21 = arith.constant 0 : index
    %c0_22 = arith.constant 0 : index
    %58 = vector.load %arg4[%c0_21, %c0_22] : memref<16x6xf32, #tpu.memory_space<vmem>>, vector<16x1xf32>
    %c0_23 = arith.constant 0 : index
    %c1_24 = arith.constant 1 : index
    %59 = vector.load %arg4[%c0_23, %c1_24] : memref<16x6xf32, #tpu.memory_space<vmem>>, vector<16x1xf32>
    %cst_25 = arith.constant 1.000000e-03 : f32
    %60 = vector.broadcast %cst_25 : f32 to vector<16x1xf32>
    %61 = arith.addf %57, %60 : vector<16x1xf32>
    %62 = math.rsqrt %61 : vector<16x1xf32>
    %63 = arith.mulf %58, %62 : vector<16x1xf32>
    %64 = arith.mulf %48, %63 : vector<16x1xf32>
    %65 = arith.subf %59, %64 : vector<16x1xf32>
    %66 = vector.broadcast %63 : vector<16x1xf32> to vector<16x92xf32>
    %67 = arith.mulf %24, %66 : vector<16x92xf32>
    %68 = vector.broadcast %65 : vector<16x1xf32> to vector<16x92xf32>
    %69 = arith.addf %67, %68 : vector<16x92xf32>
    %cst_26 = arith.constant 0.000000e+00 : f32
    %70 = vector.broadcast %cst_26 : f32 to vector<16x92xf32>
    %71 = arith.maximumf %69, %70 : vector<16x92xf32>
    %c0_27 = arith.constant 0 : index
    %c0_28 = arith.constant 0 : index
    %72 = vector.load %arg5[%c0_27, %c0_28] : memref<92x88xf32, #tpu.memory_space<vmem>>, vector<92x88xf32>
    %cst_29 = arith.constant dense<0.000000e+00> : vector<16x88xf32>
    %73 = tpu.matmul %71, %72, %cst_29 {dimension_numbers = #tpu.dot_dimension_numbers<[1], [0], [0], [1], [0, 0, 1, 1], [], []>} : vector<16x92xf32>, vector<92x88xf32>, vector<16x88xf32> -> vector<16x88xf32>
    %74 = vector.extract_strided_slice %73 {offsets = [0, 0], sizes = [16, 44], strides = [1, 1]} : vector<16x88xf32> to vector<16x44xf32>
    %75 = vector.extract_strided_slice %73 {offsets = [0, 44], sizes = [16, 44], strides = [1, 1]} : vector<16x88xf32> to vector<16x44xf32>
    %76 = arith.maximumf %74, %75 : vector<16x44xf32>
    %77 = arith.cmpf ogt, %75, %74 : vector<16x44xf32>
    %78 = arith.extui %77 : vector<16x44xi1> to vector<16x44xi32>
    %79 = tpu.iota {dimensions = array<i32: 1>} : vector<16x22xi32>
    %c2_i32 = arith.constant 2 : i32
    %80 = vector.broadcast %c2_i32 : i32 to vector<16x22xi32>
    %81 = arith.muli %80, %79 : vector<16x22xi32>
    %82 = vector.extract_strided_slice %78 {offsets = [0, 0], sizes = [16, 22], strides = [1, 1]} : vector<16x44xi32> to vector<16x22xi32>
    %83 = arith.addi %81, %82 : vector<16x22xi32>
    %c0_30 = arith.constant 0 : index
    %c0_31 = arith.constant 0 : index
    %c0_32 = arith.constant 0 : index
    %84 = vector.load %arg9[%c0_30, %c0_31, %c0_32] : memref<2x16x22xi32, #tpu.memory_space<vmem>>, vector<1x16x22xi32>
    %85 = vector.shape_cast %84 : vector<1x16x22xi32> to vector<16x22xi32>
    %86 = vector.shape_cast %83 : vector<16x22xi32> to vector<1x16x22xi32>
    tpu.vector_store %arg9[%c0_30, %c0_31, %c0_32], %86 {strides = array<i32>} : memref<2x16x22xi32, #tpu.memory_space<vmem>>, vector<1x16x22xi32>,
    %87 = vector.extract_strided_slice %78 {offsets = [0, 22], sizes = [16, 22], strides = [1, 1]} : vector<16x44xi32> to vector<16x22xi32>
    %88 = arith.addi %81, %87 : vector<16x22xi32>
    %c1_33 = arith.constant 1 : index
    %c0_34 = arith.constant 0 : index
    %c0_35 = arith.constant 0 : index
    %89 = vector.load %arg9[%c1_33, %c0_34, %c0_35] : memref<2x16x22xi32, #tpu.memory_space<vmem>>, vector<1x16x22xi32>
    %90 = vector.shape_cast %89 : vector<1x16x22xi32> to vector<16x22xi32>
    %91 = vector.shape_cast %88 : vector<16x22xi32> to vector<1x16x22xi32>
    tpu.vector_store %arg9[%c1_33, %c0_34, %c0_35], %91 {strides = array<i32>} : memref<2x16x22xi32, #tpu.memory_space<vmem>>, vector<1x16x22xi32>,
    %c0_36 = arith.constant 0 : index
    %c0_37 = arith.constant 0 : index
    %c0_38 = arith.constant 0 : index
    %92 = vector.load %arg2[%c0_36, %c0_37, %c0_38] : memref<5x16x16xf32, #tpu.memory_space<vmem>>, vector<1x16x16xf32>
    %93 = vector.shape_cast %92 : vector<1x16x16xf32> to vector<16x16xf32>
    %94 = vector.extract_strided_slice %76 {offsets = [0, 0], sizes = [16, 40], strides = [1, 1]} : vector<16x44xf32> to vector<16x40xf32>
    %cst_39 = arith.constant dense<0.000000e+00> : vector<16x40xf32>
    %95 = tpu.matmul %93, %94, %cst_39 {dimension_numbers = #tpu.dot_dimension_numbers<[1], [0], [0], [1], [0, 0, 1, 1], [], []>} : vector<16x16xf32>, vector<16x40xf32>, vector<16x40xf32> -> vector<16x40xf32>
    %c1_40 = arith.constant 1 : index
    %c0_41 = arith.constant 0 : index
    %c0_42 = arith.constant 0 : index
    %96 = vector.load %arg2[%c1_40, %c0_41, %c0_42] : memref<5x16x16xf32, #tpu.memory_space<vmem>>, vector<1x16x16xf32>
    %97 = vector.shape_cast %96 : vector<1x16x16xf32> to vector<16x16xf32>
    %98 = vector.extract_strided_slice %76 {offsets = [0, 1], sizes = [16, 40], strides = [1, 1]} : vector<16x44xf32> to vector<16x40xf32>
    %cst_43 = arith.constant dense<0.000000e+00> : vector<16x40xf32>
    %99 = tpu.matmul %97, %98, %cst_43 {dimension_numbers = #tpu.dot_dimension_numbers<[1], [0], [0], [1], [0, 0, 1, 1], [], []>} : vector<16x16xf32>, vector<16x40xf32>, vector<16x40xf32> -> vector<16x40xf32>
    %100 = arith.addf %95, %99 : vector<16x40xf32>
    %c2_44 = arith.constant 2 : index
    %c0_45 = arith.constant 0 : index
    %c0_46 = arith.constant 0 : index
    %101 = vector.load %arg2[%c2_44, %c0_45, %c0_46] : memref<5x16x16xf32, #tpu.memory_space<vmem>>, vector<1x16x16xf32>
    %102 = vector.shape_cast %101 : vector<1x16x16xf32> to vector<16x16xf32>
    %103 = vector.extract_strided_slice %76 {offsets = [0, 2], sizes = [16, 40], strides = [1, 1]} : vector<16x44xf32> to vector<16x40xf32>
    %cst_47 = arith.constant dense<0.000000e+00> : vector<16x40xf32>
    %104 = tpu.matmul %102, %103, %cst_47 {dimension_numbers = #tpu.dot_dimension_numbers<[1], [0], [0], [1], [0, 0, 1, 1], [], []>} : vector<16x16xf32>, vector<16x40xf32>, vector<16x40xf32> -> vector<16x40xf32>
    %105 = arith.addf %100, %104 : vector<16x40xf32>
    %c3_48 = arith.constant 3 : index
    %c0_49 = arith.constant 0 : index
    %c0_50 = arith.constant 0 : index
    %106 = vector.load %arg2[%c3_48, %c0_49, %c0_50] : memref<5x16x16xf32, #tpu.memory_space<vmem>>, vector<1x16x16xf32>
    %107 = vector.shape_cast %106 : vector<1x16x16xf32> to vector<16x16xf32>
    %108 = vector.extract_strided_slice %76 {offsets = [0, 3], sizes = [16, 40], strides = [1, 1]} : vector<16x44xf32> to vector<16x40xf32>
    %cst_51 = arith.constant dense<0.000000e+00> : vector<16x40xf32>
    %109 = tpu.matmul %107, %108, %cst_51 {dimension_numbers = #tpu.dot_dimension_numbers<[1], [0], [0], [1], [0, 0, 1, 1], [], []>} : vector<16x16xf32>, vector<16x40xf32>, vector<16x40xf32> -> vector<16x40xf32>
    %110 = arith.addf %105, %109 : vector<16x40xf32>
    %c4_52 = arith.constant 4 : index
    %c0_53 = arith.constant 0 : index
    %c0_54 = arith.constant 0 : index
    %111 = vector.load %arg2[%c4_52, %c0_53, %c0_54] : memref<5x16x16xf32, #tpu.memory_space<vmem>>, vector<1x16x16xf32>
    %112 = vector.shape_cast %111 : vector<1x16x16xf32> to vector<16x16xf32>
    %113 = vector.extract_strided_slice %76 {offsets = [0, 4], sizes = [16, 40], strides = [1, 1]} : vector<16x44xf32> to vector<16x40xf32>
    %cst_55 = arith.constant dense<0.000000e+00> : vector<16x40xf32>
    %114 = tpu.matmul %112, %113, %cst_55 {dimension_numbers = #tpu.dot_dimension_numbers<[1], [0], [0], [1], [0, 0, 1, 1], [], []>} : vector<16x16xf32>, vector<16x40xf32>, vector<16x40xf32> -> vector<16x40xf32>
    %115 = arith.addf %110, %114 : vector<16x40xf32>
    %116 = tpu.iota {dimensions = array<i32: 1>} : vector<1x40xi32>
    %cst_56 = arith.constant 0.000000e+00 : f32
    %117 = vector.broadcast %cst_56 : f32 to vector<1x40xf32>
    %c0_i32_57 = arith.constant 0 : i32
    %118 = vector.broadcast %c0_i32_57 : i32 to vector<1x40xi32>
    %119 = arith.cmpi sge, %116, %118 : vector<1x40xi32>
    %c18_i32 = arith.constant 18 : i32
    %120 = vector.broadcast %c18_i32 : i32 to vector<1x40xi32>
    %121 = arith.cmpi slt, %116, %120 : vector<1x40xi32>
    %122 = arith.andi %119, %121 : vector<1x40xi1>
    %123 = arith.extui %122 : vector<1x40xi1> to vector<1x40xi32>
    %124 = arith.sitofp %123 : vector<1x40xi32> to vector<1x40xf32>
    %125 = arith.maximumf %117, %124 : vector<1x40xf32>
    %c22_i32 = arith.constant 22 : i32
    %126 = vector.broadcast %c22_i32 : i32 to vector<1x40xi32>
    %127 = arith.cmpi sge, %116, %126 : vector<1x40xi32>
    %c40_i32 = arith.constant 40 : i32
    %128 = vector.broadcast %c40_i32 : i32 to vector<1x40xi32>
    %129 = arith.cmpi slt, %116, %128 : vector<1x40xi32>
    %130 = arith.andi %127, %129 : vector<1x40xi1>
    %131 = arith.extui %130 : vector<1x40xi1> to vector<1x40xi32>
    %132 = arith.sitofp %131 : vector<1x40xi32> to vector<1x40xf32>
    %133 = arith.maximumf %125, %132 : vector<1x40xf32>
    %134 = vector.broadcast %133 : vector<1x40xf32> to vector<16x40xf32>
    %135 = arith.mulf %115, %134 : vector<16x40xf32>
    %cst_58 = arith.constant dense<0.000000e+00> : vector<16xf32>
    %136 = vector.multi_reduction <add>, %135, %cst_58 [1] : vector<16x40xf32> to vector<16xf32>
    %137 = vector.shape_cast %136 : vector<16xf32> to vector<16x1xf32>
    %cst_59 = arith.constant 3.600000e+01 : f32
    %138 = vector.broadcast %cst_59 : f32 to vector<16x1xf32>
    %139 = arith.divf %137, %138 : vector<16x1xf32>
    %140 = vector.broadcast %139 : vector<16x1xf32> to vector<16x40xf32>
    %141 = arith.subf %115, %140 : vector<16x40xf32>
    %142 = arith.mulf %141, %141 : vector<16x40xf32>
    %143 = vector.broadcast %133 : vector<1x40xf32> to vector<16x40xf32>
    %144 = arith.mulf %142, %143 : vector<16x40xf32>
    %cst_60 = arith.constant dense<0.000000e+00> : vector<16xf32>
    %145 = vector.multi_reduction <add>, %144, %cst_60 [1] : vector<16x40xf32> to vector<16xf32>
    %146 = vector.shape_cast %145 : vector<16xf32> to vector<16x1xf32>
    %cst_61 = arith.constant 3.600000e+01 : f32
    %147 = vector.broadcast %cst_61 : f32 to vector<16x1xf32>
    %148 = arith.divf %146, %147 : vector<16x1xf32>
    %c0_62 = arith.constant 0 : index
    %c2_63 = arith.constant 2 : index
    %149 = vector.load %arg4[%c0_62, %c2_63] : memref<16x6xf32, #tpu.memory_space<vmem>>, vector<16x1xf32>
    %c0_64 = arith.constant 0 : index
    %c3_65 = arith.constant 3 : index
    %150 = vector.load %arg4[%c0_64, %c3_65] : memref<16x6xf32, #tpu.memory_space<vmem>>, vector<16x1xf32>
    %cst_66 = arith.constant 1.000000e-03 : f32
    %151 = vector.broadcast %cst_66 : f32 to vector<16x1xf32>
    %152 = arith.addf %148, %151 : vector<16x1xf32>
    %153 = math.rsqrt %152 : vector<16x1xf32>
    %154 = arith.mulf %149, %153 : vector<16x1xf32>
    %155 = arith.mulf %139, %154 : vector<16x1xf32>
    %156 = arith.subf %150, %155 : vector<16x1xf32>
    %157 = vector.broadcast %154 : vector<16x1xf32> to vector<16x40xf32>
    %158 = arith.mulf %115, %157 : vector<16x40xf32>
    %159 = vector.broadcast %156 : vector<16x1xf32> to vector<16x40xf32>
    %160 = arith.addf %158, %159 : vector<16x40xf32>
    %cst_67 = arith.constant 0.000000e+00 : f32
    %161 = vector.broadcast %cst_67 : f32 to vector<16x40xf32>
    %162 = arith.maximumf %160, %161 : vector<16x40xf32>
    %c0_68 = arith.constant 0 : index
    %c0_69 = arith.constant 0 : index
    %163 = vector.load %arg6[%c0_68, %c0_69] : memref<40x36xf32, #tpu.memory_space<vmem>>, vector<40x36xf32>
    %cst_70 = arith.constant dense<0.000000e+00> : vector<16x36xf32>
    %164 = tpu.matmul %162, %163, %cst_70 {dimension_numbers = #tpu.dot_dimension_numbers<[1], [0], [0], [1], [0, 0, 1, 1], [], []>} : vector<16x40xf32>, vector<40x36xf32>, vector<16x36xf32> -> vector<16x36xf32>
    %165 = vector.extract_strided_slice %164 {offsets = [0, 0], sizes = [16, 18], strides = [1, 1]} : vector<16x36xf32> to vector<16x18xf32>
    %166 = vector.extract_strided_slice %164 {offsets = [0, 18], sizes = [16, 18], strides = [1, 1]} : vector<16x36xf32> to vector<16x18xf32>
    %167 = arith.maximumf %165, %166 : vector<16x18xf32>
    %168 = arith.cmpf ogt, %166, %165 : vector<16x18xf32>
    %169 = arith.extui %168 : vector<16x18xi1> to vector<16x18xi32>
    %170 = tpu.iota {dimensions = array<i32: 1>} : vector<16x9xi32>
    %c2_i32_71 = arith.constant 2 : i32
    %171 = vector.broadcast %c2_i32_71 : i32 to vector<16x9xi32>
    %172 = arith.muli %171, %170 : vector<16x9xi32>
    %173 = vector.extract_strided_slice %169 {offsets = [0, 0], sizes = [16, 9], strides = [1, 1]} : vector<16x18xi32> to vector<16x9xi32>
    %174 = arith.addi %172, %173 : vector<16x9xi32>
    %c0_72 = arith.constant 0 : index
    %c0_73 = arith.constant 0 : index
    %c0_74 = arith.constant 0 : index
    %175 = vector.load %arg10[%c0_72, %c0_73, %c0_74] : memref<2x16x9xi32, #tpu.memory_space<vmem>>, vector<1x16x9xi32>
    %176 = vector.shape_cast %175 : vector<1x16x9xi32> to vector<16x9xi32>
    %177 = vector.shape_cast %174 : vector<16x9xi32> to vector<1x16x9xi32>
    tpu.vector_store %arg10[%c0_72, %c0_73, %c0_74], %177 {strides = array<i32>} : memref<2x16x9xi32, #tpu.memory_space<vmem>>, vector<1x16x9xi32>,
    %178 = vector.extract_strided_slice %169 {offsets = [0, 9], sizes = [16, 9], strides = [1, 1]} : vector<16x18xi32> to vector<16x9xi32>
    %179 = arith.addi %172, %178 : vector<16x9xi32>
    %c1_75 = arith.constant 1 : index
    %c0_76 = arith.constant 0 : index
    %c0_77 = arith.constant 0 : index
    %180 = vector.load %arg10[%c1_75, %c0_76, %c0_77] : memref<2x16x9xi32, #tpu.memory_space<vmem>>, vector<1x16x9xi32>
    %181 = vector.shape_cast %180 : vector<1x16x9xi32> to vector<16x9xi32>
    %182 = vector.shape_cast %179 : vector<16x9xi32> to vector<1x16x9xi32>
    tpu.vector_store %arg10[%c1_75, %c0_76, %c0_77], %182 {strides = array<i32>} : memref<2x16x9xi32, #tpu.memory_space<vmem>>, vector<1x16x9xi32>,
    %c0_78 = arith.constant 0 : index
    %c0_79 = arith.constant 0 : index
    %c0_80 = arith.constant 0 : index
    %183 = vector.load %arg3[%c0_78, %c0_79, %c0_80] : memref<5x16x16xf32, #tpu.memory_space<vmem>>, vector<1x16x16xf32>
    %184 = vector.shape_cast %183 : vector<1x16x16xf32> to vector<16x16xf32>
    %185 = vector.extract_strided_slice %167 {offsets = [0, 0], sizes = [16, 14], strides = [1, 1]} : vector<16x18xf32> to vector<16x14xf32>
    %cst_81 = arith.constant dense<0.000000e+00> : vector<16x14xf32>
    %186 = tpu.matmul %184, %185, %cst_81 {dimension_numbers = #tpu.dot_dimension_numbers<[1], [0], [0], [1], [0, 0, 1, 1], [], []>} : vector<16x16xf32>, vector<16x14xf32>, vector<16x14xf32> -> vector<16x14xf32>
    %c1_82 = arith.constant 1 : index
    %c0_83 = arith.constant 0 : index
    %c0_84 = arith.constant 0 : index
    %187 = vector.load %arg3[%c1_82, %c0_83, %c0_84] : memref<5x16x16xf32, #tpu.memory_space<vmem>>, vector<1x16x16xf32>
    %188 = vector.shape_cast %187 : vector<1x16x16xf32> to vector<16x16xf32>
    %189 = vector.extract_strided_slice %167 {offsets = [0, 1], sizes = [16, 14], strides = [1, 1]} : vector<16x18xf32> to vector<16x14xf32>
    %cst_85 = arith.constant dense<0.000000e+00> : vector<16x14xf32>
    %190 = tpu.matmul %188, %189, %cst_85 {dimension_numbers = #tpu.dot_dimension_numbers<[1], [0], [0], [1], [0, 0, 1, 1], [], []>} : vector<16x16xf32>, vector<16x14xf32>, vector<16x14xf32> -> vector<16x14xf32>
    %191 = arith.addf %186, %190 : vector<16x14xf32>
    %c2_86 = arith.constant 2 : index
    %c0_87 = arith.constant 0 : index
    %c0_88 = arith.constant 0 : index
    %192 = vector.load %arg3[%c2_86, %c0_87, %c0_88] : memref<5x16x16xf32, #tpu.memory_space<vmem>>, vector<1x16x16xf32>
    %193 = vector.shape_cast %192 : vector<1x16x16xf32> to vector<16x16xf32>
    %194 = vector.extract_strided_slice %167 {offsets = [0, 2], sizes = [16, 14], strides = [1, 1]} : vector<16x18xf32> to vector<16x14xf32>
    %cst_89 = arith.constant dense<0.000000e+00> : vector<16x14xf32>
    %195 = tpu.matmul %193, %194, %cst_89 {dimension_numbers = #tpu.dot_dimension_numbers<[1], [0], [0], [1], [0, 0, 1, 1], [], []>} : vector<16x16xf32>, vector<16x14xf32>, vector<16x14xf32> -> vector<16x14xf32>
    %196 = arith.addf %191, %195 : vector<16x14xf32>
    %c3_90 = arith.constant 3 : index
    %c0_91 = arith.constant 0 : index
    %c0_92 = arith.constant 0 : index
    %197 = vector.load %arg3[%c3_90, %c0_91, %c0_92] : memref<5x16x16xf32, #tpu.memory_space<vmem>>, vector<1x16x16xf32>
    %198 = vector.shape_cast %197 : vector<1x16x16xf32> to vector<16x16xf32>
    %199 = vector.extract_strided_slice %167 {offsets = [0, 3], sizes = [16, 14], strides = [1, 1]} : vector<16x18xf32> to vector<16x14xf32>
    %cst_93 = arith.constant dense<0.000000e+00> : vector<16x14xf32>
    %200 = tpu.matmul %198, %199, %cst_93 {dimension_numbers = #tpu.dot_dimension_numbers<[1], [0], [0], [1], [0, 0, 1, 1], [], []>} : vector<16x16xf32>, vector<16x14xf32>, vector<16x14xf32> -> vector<16x14xf32>
    %201 = arith.addf %196, %200 : vector<16x14xf32>
    %c4_94 = arith.constant 4 : index
    %c0_95 = arith.constant 0 : index
    %c0_96 = arith.constant 0 : index
    %202 = vector.load %arg3[%c4_94, %c0_95, %c0_96] : memref<5x16x16xf32, #tpu.memory_space<vmem>>, vector<1x16x16xf32>
    %203 = vector.shape_cast %202 : vector<1x16x16xf32> to vector<16x16xf32>
    %204 = vector.extract_strided_slice %167 {offsets = [0, 4], sizes = [16, 14], strides = [1, 1]} : vector<16x18xf32> to vector<16x14xf32>
    %cst_97 = arith.constant dense<0.000000e+00> : vector<16x14xf32>
    %205 = tpu.matmul %203, %204, %cst_97 {dimension_numbers = #tpu.dot_dimension_numbers<[1], [0], [0], [1], [0, 0, 1, 1], [], []>} : vector<16x16xf32>, vector<16x14xf32>, vector<16x14xf32> -> vector<16x14xf32>
    %206 = arith.addf %201, %205 : vector<16x14xf32>
    %207 = tpu.iota {dimensions = array<i32: 1>} : vector<1x14xi32>
    %cst_98 = arith.constant 0.000000e+00 : f32
    %208 = vector.broadcast %cst_98 : f32 to vector<1x14xf32>
    %c0_i32_99 = arith.constant 0 : i32
    %209 = vector.broadcast %c0_i32_99 : i32 to vector<1x14xi32>
    %210 = arith.cmpi sge, %207, %209 : vector<1x14xi32>
    %c5_i32 = arith.constant 5 : i32
    %211 = vector.broadcast %c5_i32 : i32 to vector<1x14xi32>
    %212 = arith.cmpi slt, %207, %211 : vector<1x14xi32>
    %213 = arith.andi %210, %212 : vector<1x14xi1>
    %214 = arith.extui %213 : vector<1x14xi1> to vector<1x14xi32>
    %215 = arith.sitofp %214 : vector<1x14xi32> to vector<1x14xf32>
    %216 = arith.maximumf %208, %215 : vector<1x14xf32>
    %c9_i32 = arith.constant 9 : i32
    %217 = vector.broadcast %c9_i32 : i32 to vector<1x14xi32>
    %218 = arith.cmpi sge, %207, %217 : vector<1x14xi32>
    %c14_i32 = arith.constant 14 : i32
    %219 = vector.broadcast %c14_i32 : i32 to vector<1x14xi32>
    %220 = arith.cmpi slt, %207, %219 : vector<1x14xi32>
    %221 = arith.andi %218, %220 : vector<1x14xi1>
    %222 = arith.extui %221 : vector<1x14xi1> to vector<1x14xi32>
    %223 = arith.sitofp %222 : vector<1x14xi32> to vector<1x14xf32>
    %224 = arith.maximumf %216, %223 : vector<1x14xf32>
    %225 = vector.broadcast %224 : vector<1x14xf32> to vector<16x14xf32>
    %226 = arith.mulf %206, %225 : vector<16x14xf32>
    %cst_100 = arith.constant dense<0.000000e+00> : vector<16xf32>
    %227 = vector.multi_reduction <add>, %226, %cst_100 [1] : vector<16x14xf32> to vector<16xf32>
    %228 = vector.shape_cast %227 : vector<16xf32> to vector<16x1xf32>
    %cst_101 = arith.constant 1.000000e+01 : f32
    %229 = vector.broadcast %cst_101 : f32 to vector<16x1xf32>
    %230 = arith.divf %228, %229 : vector<16x1xf32>
    %231 = vector.broadcast %230 : vector<16x1xf32> to vector<16x14xf32>
    %232 = arith.subf %206, %231 : vector<16x14xf32>
    %233 = arith.mulf %232, %232 : vector<16x14xf32>
    %234 = vector.broadcast %224 : vector<1x14xf32> to vector<16x14xf32>
    %235 = arith.mulf %233, %234 : vector<16x14xf32>
    %cst_102 = arith.constant dense<0.000000e+00> : vector<16xf32>
    %236 = vector.multi_reduction <add>, %235, %cst_102 [1] : vector<16x14xf32> to vector<16xf32>
    %237 = vector.shape_cast %236 : vector<16xf32> to vector<16x1xf32>
    %cst_103 = arith.constant 1.000000e+01 : f32
    %238 = vector.broadcast %cst_103 : f32 to vector<16x1xf32>
    %239 = arith.divf %237, %238 : vector<16x1xf32>
    %c0_104 = arith.constant 0 : index
    %c4_105 = arith.constant 4 : index
    %240 = vector.load %arg4[%c0_104, %c4_105] : memref<16x6xf32, #tpu.memory_space<vmem>>, vector<16x1xf32>
    %c0_106 = arith.constant 0 : index
    %c5 = arith.constant 5 : index
    %241 = vector.load %arg4[%c0_106, %c5] : memref<16x6xf32, #tpu.memory_space<vmem>>, vector<16x1xf32>
    %cst_107 = arith.constant 1.000000e-03 : f32
    %242 = vector.broadcast %cst_107 : f32 to vector<16x1xf32>
    %243 = arith.addf %239, %242 : vector<16x1xf32>
    %244 = math.rsqrt %243 : vector<16x1xf32>
    %245 = arith.mulf %240, %244 : vector<16x1xf32>
    %246 = arith.mulf %230, %245 : vector<16x1xf32>
    %247 = arith.subf %241, %246 : vector<16x1xf32>
    %248 = vector.broadcast %245 : vector<16x1xf32> to vector<16x14xf32>
    %249 = arith.mulf %206, %248 : vector<16x14xf32>
    %250 = vector.broadcast %247 : vector<16x1xf32> to vector<16x14xf32>
    %251 = arith.addf %249, %250 : vector<16x14xf32>
    %cst_108 = arith.constant 0.000000e+00 : f32
    %252 = vector.broadcast %cst_108 : f32 to vector<16x14xf32>
    %253 = arith.maximumf %251, %252 : vector<16x14xf32>
    %c0_109 = arith.constant 0 : index
    %c0_110 = arith.constant 0 : index
    %254 = vector.load %arg7[%c0_109, %c0_110] : memref<14x8xf32, #tpu.memory_space<vmem>>, vector<14x8xf32>
    %cst_111 = arith.constant dense<0.000000e+00> : vector<16x8xf32>
    %255 = tpu.matmul %253, %254, %cst_111 {dimension_numbers = #tpu.dot_dimension_numbers<[1], [0], [0], [1], [0, 0, 1, 1], [], []>} : vector<16x14xf32>, vector<14x8xf32>, vector<16x8xf32> -> vector<16x8xf32>
    %256 = vector.extract_strided_slice %255 {offsets = [0, 0], sizes = [16, 4], strides = [1, 1]} : vector<16x8xf32> to vector<16x4xf32>
    %257 = vector.extract_strided_slice %255 {offsets = [0, 4], sizes = [16, 4], strides = [1, 1]} : vector<16x8xf32> to vector<16x4xf32>
    %258 = arith.maximumf %256, %257 : vector<16x4xf32>
    %259 = arith.cmpf ogt, %257, %256 : vector<16x4xf32>
    %260 = arith.extui %259 : vector<16x4xi1> to vector<16x4xi32>
    %261 = tpu.iota {dimensions = array<i32: 1>} : vector<16x2xi32>
    %c2_i32_112 = arith.constant 2 : i32
    %262 = vector.broadcast %c2_i32_112 : i32 to vector<16x2xi32>
    %263 = arith.muli %262, %261 : vector<16x2xi32>
    %264 = vector.extract_strided_slice %260 {offsets = [0, 0], sizes = [16, 2], strides = [1, 1]} : vector<16x4xi32> to vector<16x2xi32>
    %265 = arith.addi %263, %264 : vector<16x2xi32>
    %c0_113 = arith.constant 0 : index
    %c0_114 = arith.constant 0 : index
    %c0_115 = arith.constant 0 : index
    %266 = vector.load %arg11[%c0_113, %c0_114, %c0_115] : memref<2x16x2xi32, #tpu.memory_space<vmem>>, vector<1x16x2xi32>
    %267 = vector.shape_cast %266 : vector<1x16x2xi32> to vector<16x2xi32>
    %268 = vector.shape_cast %265 : vector<16x2xi32> to vector<1x16x2xi32>
    tpu.vector_store %arg11[%c0_113, %c0_114, %c0_115], %268 {strides = array<i32>} : memref<2x16x2xi32, #tpu.memory_space<vmem>>, vector<1x16x2xi32>,
    %269 = vector.extract_strided_slice %258 {offsets = [0, 0], sizes = [16, 2], strides = [1, 1]} : vector<16x4xf32> to vector<16x2xf32>
    %c0_116 = arith.constant 0 : index
    %c0_117 = arith.constant 0 : index
    %c0_118 = arith.constant 0 : index
    %270 = vector.load %arg8[%c0_116, %c0_117, %c0_118] : memref<2x16x2xf32, #tpu.memory_space<vmem>>, vector<1x16x2xf32>
    %271 = vector.shape_cast %270 : vector<1x16x2xf32> to vector<16x2xf32>
    %272 = vector.shape_cast %269 : vector<16x2xf32> to vector<1x16x2xf32>
    tpu.vector_store %arg8[%c0_116, %c0_117, %c0_118], %272 {strides = array<i32>} : memref<2x16x2xf32, #tpu.memory_space<vmem>>, vector<1x16x2xf32>,
    %273 = vector.extract_strided_slice %260 {offsets = [0, 2], sizes = [16, 2], strides = [1, 1]} : vector<16x4xi32> to vector<16x2xi32>
    %274 = arith.addi %263, %273 : vector<16x2xi32>
    %c1_119 = arith.constant 1 : index
    %c0_120 = arith.constant 0 : index
    %c0_121 = arith.constant 0 : index
    %275 = vector.load %arg11[%c1_119, %c0_120, %c0_121] : memref<2x16x2xi32, #tpu.memory_space<vmem>>, vector<1x16x2xi32>
    %276 = vector.shape_cast %275 : vector<1x16x2xi32> to vector<16x2xi32>
    %277 = vector.shape_cast %274 : vector<16x2xi32> to vector<1x16x2xi32>
    tpu.vector_store %arg11[%c1_119, %c0_120, %c0_121], %277 {strides = array<i32>} : memref<2x16x2xi32, #tpu.memory_space<vmem>>, vector<1x16x2xi32>,
    %278 = vector.extract_strided_slice %258 {offsets = [0, 2], sizes = [16, 2], strides = [1, 1]} : vector<16x4xf32> to vector<16x2xf32>
    %c1_122 = arith.constant 1 : index
    %c0_123 = arith.constant 0 : index
    %c0_124 = arith.constant 0 : index
    %279 = vector.load %arg8[%c1_122, %c0_123, %c0_124] : memref<2x16x2xf32, #tpu.memory_space<vmem>>, vector<1x16x2xf32>
    %280 = vector.shape_cast %279 : vector<1x16x2xf32> to vector<16x2xf32>
    %281 = vector.shape_cast %278 : vector<16x2xf32> to vector<1x16x2xf32>
    tpu.vector_store %arg8[%c1_122, %c0_123, %c0_124], %281 {strides = array<i32>} : memref<2x16x2xf32, #tpu.memory_space<vmem>>, vector<1x16x2xf32>,
    return
  }
}

</mosaic_0001>

<llo_original>
// kernel: tpu_custom_call.1
$region0: #{tpu_custom_call.1}
  #allocation0 [shape = 'u32[]', space=smem, size = 0x4, offset = 0x4, fixed_abs, tag = 'smem constant byte address 0x4 - core index']
  #allocation1 [shape = 'u32[72,128]{1,0:T(1,128)}', space=vmem, size = 0x9000, scoped, tag = 'internal scratch']
  %s0 = inlined_call_operand.vmem [shape: f32[16,96], index: 0, kind: input, shape index: {}]
  %s1 = inlined_call_operand.vmem [shape: f32[5,16,16], index: 1, kind: input, shape index: {}]
  %s2 = inlined_call_operand.vmem [shape: f32[5,16,16], index: 2, kind: input, shape index: {}]
  %s3 = inlined_call_operand.hbm [shape: f32[5,16,16], index: 3, kind: input, shape index: {}]
  %s4 = inlined_call_operand.vmem [shape: f32[16,6], index: 4, kind: input, shape index: {}]
  %s5 = inlined_call_operand.vmem [shape: f32[92,88], index: 5, kind: input, shape index: {}]
  %s6 = inlined_call_operand.vmem [shape: f32[40,36], index: 6, kind: input, shape index: {}]
  %s7 = inlined_call_operand.vmem [shape: f32[14,8], index: 7, kind: input, shape index: {}]
  %s8 = inlined_call_operand.vmem [shape: f32[2,16,2], index: 8, kind: output, shape index: {0}]
  %s9 = inlined_call_operand.hbm [shape: s32[2,16,22], index: 9, kind: output, shape index: {1}]
  %s10 = inlined_call_operand.vmem [shape: s32[2,16,9], index: 10, kind: output, shape index: {2}]
  %s11 = inlined_call_operand.vmem [shape: s32[2,16,2], index: 11, kind: output, shape index: {3}]
  %12 = xla_tuple %s8, %s9, %s10, %s11
  %s13 = sld [smem:[#allocation0]]
  $region70: #{tpu_custom_call.1} parent=0
    _
  %s15 = ssub.s32 1, %s13
  %s16 = scalar_select 0, %s15, %s13
  $region1: #{tpu_custom_call.1} parent=0
    #allocation2 [shape = 'u8[40960]{0}', space=vmem, size = 0xa000, scoped, tag = 'input window, operand 3, single buffered']
    #allocation3 [shape = 's32[1]{0}', space=sflag, size = 0x4, scoped, tag = 'scoped memory for tpu_custom_call.1']
    #allocation4 [shape = 's32[1]{0}', space=sflag, size = 0x4, scoped, tag = 'scoped memory for tpu_custom_call.1']
    #allocation5 [shape = 'u8[16384]{0}', space=vmem, size = 0x4000, scoped, tag = 'output window, operand 1, single buffered']
    %17 = vsyncpa [#allocation3], 0
    %18 = vsyncpa [#allocation4], 0
    // Predicated region
    $region2: #{tpu_custom_call.1} parent=1 // pred_check
      _
    $region3: #{tpu_custom_call.1} parent=1 // pred_check_branch
      %20 = sbr.rel (0) target = $region5
    $region4: #{tpu_custom_call.1} parent=1 // pred_region
      _
    $region5: #{tpu_custom_call.1} parent=1 // pred_fallthru
      _
    // Predicated region
    $region6: #{tpu_custom_call.1} parent=1 // pred_check
      _
    $region7: #{tpu_custom_call.1} parent=1 // pred_check_branch
      %22 = sbr.rel (0) target = $region9
    $region8: #{tpu_custom_call.1} parent=1 // pred_region
      _
    $region9: #{tpu_custom_call.1} parent=1 // pred_fallthru
      _
    // Predicated region
    $region10: #{tpu_custom_call.1} parent=1 // pred_check
      _
    $region11: #{tpu_custom_call.1} parent=1 // pred_check_branch
      %24 = sbr.rel (0) target = $region13
    $region12: #{tpu_custom_call.1} parent=1 // pred_region
      _
    $region13: #{tpu_custom_call.1} parent=1 // pred_fallthru
      _
    // Predicated region
    $region14: #{tpu_custom_call.1} parent=1 // pred_check
      _
    $region15: #{tpu_custom_call.1} parent=1 // pred_check_branch
      %26 = sbr.rel (0) target = $region17
    $region16: #{tpu_custom_call.1} parent=1 // pred_region
      %28 = vsyncadd [#allocation3], 0
      %s29 = sshll.u32 %s3, 4
      %s30 = int_to_ptr.hbm [resolvable:$true] %s29
      %s31 = sshll.u32 [#allocation2], 4
      %s32 = int_to_ptr.vmem [resolvable:$true] %s31
      %37 = dma.hbm_to_vmem [thread:$0]  %s30, 1280, %s32, [#allocation3], 128, 128, 8
    $region17: #{tpu_custom_call.1} parent=1 // pred_fallthru
      _
    // Predicated region
    $region18: #{tpu_custom_call.1} parent=1 // pred_check
      _
    $region19: #{tpu_custom_call.1} parent=1 // pred_check_branch
      %39 = sbr.rel (0) target = $region21
    $region20: #{tpu_custom_call.1} parent=1 // pred_region
      _
    $region21: #{tpu_custom_call.1} parent=1 // pred_fallthru
      _
    // Predicated region
    $region22: #{tpu_custom_call.1} parent=1 // pred_check
      _
    $region23: #{tpu_custom_call.1} parent=1 // pred_check_branch
      %41 = sbr.rel (0) target = $region25
    $region24: #{tpu_custom_call.1} parent=1 // pred_region
      _
    $region25: #{tpu_custom_call.1} parent=1 // pred_fallthru
      _
    // Predicated region
    $region26: #{tpu_custom_call.1} parent=1 // pred_check
      _
    $region27: #{tpu_custom_call.1} parent=1 // pred_check_branch
      %43 = sbr.rel (0) target = $region29
    $region28: #{tpu_custom_call.1} parent=1 // pred_region
      _
    $region29: #{tpu_custom_call.1} parent=1 // pred_fallthru
      _
    // Predicated region
    $region30: #{tpu_custom_call.1} parent=1 // pred_check
      _
    $region31: #{tpu_custom_call.1} parent=1 // pred_check_branch
      %45 = sbr.rel (0) target = $region33
    $region32: #{tpu_custom_call.1} parent=1 // pred_region
      _
    $region33: #{tpu_custom_call.1} parent=1 // pred_fallthru
      _
    // Predicated region
    $region34: #{tpu_custom_call.1} parent=1 // pred_check
      _
    $region35: #{tpu_custom_call.1} parent=1 // pred_check_branch
      %47 = sbr.rel (0) target = $region37
    $region36: #{tpu_custom_call.1} parent=1 // pred_region
      %49 = dma.done [#allocation3], 1280
    $region37: #{tpu_custom_call.1} parent=1 // pred_fallthru
      _
    %v50 = vld [vmem:[%s0] sm:$0xff]
    %v51 = vld [vmem:[%s0 + $0x8] sm:$0xff]
    %v52 = vld [vmem:[%s1] sm:$0xff]
    %v53 = vld [vmem:[%s1 + $0x8] sm:$0xff]
    %s54 = scalar_lea.vmem %s1, 16
    %v55 = vld [vmem:[%s54] sm:$0xff]
    %v56 = vld [vmem:[%s54 + $0x8] sm:$0xff]
    %59 = vrot.lane.b32.xlu0 %v50, 127
    %v60 = vpop.permute.xlu0 %59
    %61 = vrot.lane.b32.xlu0 %v51, 127
    %v62 = vpop.permute.xlu0 %61
    %vm65 = vcmask 130048
    %v67 = vsel %vm65, %v55, 0
    %v70 = vsel %vm65, %v56, 0
    %72 = vmatpush.msra.mxu0 0.0
    %73 = vmatpush.msra.mxu0 0.0
    %74 = vmatpush.msra.mxu0 0.0
    %75 = vmatpush.msra.mxu0 0.0
    %76 = vmatpush.msra.mxu0 0.0
    %77 = vmatpush.msra.mxu0 0.0
    %78 = vmatpush.msra.mxu0 0.0
    %79 = vmatpush.msra.mxu0 0.0
    %80 = vmatpush.msra.mxu0 0.0
    %81 = vmatpush.msra.mxu0 0.0
    %82 = vmatpush.msra.mxu0 0.0
    %83 = vmatpush.msra.mxu0 0.0
    %84 = vmatpush.msra.mxu0 0.0
    %85 = vmatpush.msra.mxu0 0.0
    %86 = vmatpush.msra.mxu0 %v62
    %87 = vmatpush.msra.mxu0 %v60
    %88 = vmatmul.f32.gmra.mxu0 %v67
    %v89 = vpop.f32.mrf.mxu0
    %v90 = vadd.f32 0.0, %v89
    %91 = vmatmul.f32.gmra.mxu0 %v70
    %v92 = vpop.f32.mrf.mxu0
    %v93 = vadd.f32 0.0, %v92
    %94 = vdwg.mxu0
    %v96 = vsel %vm65, %v52, 0
    %v99 = vsel %vm65, %v53, 0
    %101 = vmatpush.msra.mxu0 0.0
    %102 = vmatpush.msra.mxu0 0.0
    %103 = vmatpush.msra.mxu0 0.0
    %104 = vmatpush.msra.mxu0 0.0
    %105 = vmatpush.msra.mxu0 0.0
    %106 = vmatpush.msra.mxu0 0.0
    %107 = vmatpush.msra.mxu0 0.0
    %108 = vmatpush.msra.mxu0 0.0
    %109 = vmatpush.msra.mxu0 0.0
    %110 = vmatpush.msra.mxu0 0.0
    %111 = vmatpush.msra.mxu0 0.0
    %112 = vmatpush.msra.mxu0 0.0
    %113 = vmatpush.msra.mxu0 0.0
    %114 = vmatpush.msra.mxu0 0.0
    %115 = vmatpush.msra.mxu0 %v51
    %116 = vmatpush.msra.mxu0 %v50
    %117 = vmatmul.f32.gmra.mxu0 %v96
    %v118 = vpop.f32.mrf.mxu0
    %v119 = vadd.f32 %v90, %v118
    %120 = vmatmul.f32.gmra.mxu0 %v99
    %v121 = vpop.f32.mrf.mxu0
    %v122 = vadd.f32 %v93, %v121
    %123 = vdwg.mxu0
    %s124 = scalar_lea.vmem %s1, 32
    %v125 = vld [vmem:[%s124] sm:$0xff]
    %v126 = vld [vmem:[%s124 + $0x8] sm:$0xff]
    %127 = vrot.lane.b32.xlu0 %v50, 126
    %v128 = vpop.permute.xlu0 %127
    %129 = vrot.lane.b32.xlu0 %v51, 126
    %v130 = vpop.permute.xlu0 %129
    %v134 = vsel %vm65, %v125, 0
    %v137 = vsel %vm65, %v126, 0
    %139 = vmatpush.msra.mxu0 0.0
    %140 = vmatpush.msra.mxu0 0.0
    %141 = vmatpush.msra.mxu0 0.0
    %142 = vmatpush.msra.mxu0 0.0
    %143 = vmatpush.msra.mxu0 0.0
    %144 = vmatpush.msra.mxu0 0.0
    %145 = vmatpush.msra.mxu0 0.0
    %146 = vmatpush.msra.mxu0 0.0
    %147 = vmatpush.msra.mxu0 0.0
    %148 = vmatpush.msra.mxu0 0.0
    %149 = vmatpush.msra.mxu0 0.0
    %150 = vmatpush.msra.mxu0 0.0
    %151 = vmatpush.msra.mxu0 0.0
    %152 = vmatpush.msra.mxu0 0.0
    %153 = vmatpush.msra.mxu0 %v130
    %154 = vmatpush.msra.mxu0 %v128
    %155 = vmatmul.f32.gmra.mxu0 %v134
    %v156 = vpop.f32.mrf.mxu0
    %v157 = vadd.f32 0.0, %v156
    %158 = vmatmul.f32.gmra.mxu0 %v137
    %v159 = vpop.f32.mrf.mxu0
    %v160 = vadd.f32 0.0, %v159
    %161 = vdwg.mxu0
    %v162 = vadd.f32 %v119, %v157
    %v163 = vadd.f32 %v122, %v160
    %s164 = scalar_lea.vmem %s1, 48
    %v165 = vld [vmem:[%s164] sm:$0xff]
    %v166 = vld [vmem:[%s164 + $0x8] sm:$0xff]
    %167 = vrot.lane.b32.xlu0 %v50, 125
    %v168 = vpop.permute.xlu0 %167
    %169 = vrot.lane.b32.xlu0 %v51, 125
    %v170 = vpop.permute.xlu0 %169
    %v174 = vsel %vm65, %v165, 0
    %v177 = vsel %vm65, %v166, 0
    %179 = vmatpush.msra.mxu0 0.0
    %180 = vmatpush.msra.mxu0 0.0
    %181 = vmatpush.msra.mxu0 0.0
    %182 = vmatpush.msra.mxu0 0.0
    %183 = vmatpush.msra.mxu0 0.0
    %184 = vmatpush.msra.mxu0 0.0
    %185 = vmatpush.msra.mxu0 0.0
    %186 = vmatpush.msra.mxu0 0.0
    %187 = vmatpush.msra.mxu0 0.0
    %188 = vmatpush.msra.mxu0 0.0
    %189 = vmatpush.msra.mxu0 0.0
    %190 = vmatpush.msra.mxu0 0.0
    %191 = vmatpush.msra.mxu0 0.0
    %192 = vmatpush.msra.mxu0 0.0
    %193 = vmatpush.msra.mxu0 %v170
    %194 = vmatpush.msra.mxu0 %v168
    %195 = vmatmul.f32.gmra.mxu0 %v174
    %v196 = vpop.f32.mrf.mxu0
    %v197 = vadd.f32 0.0, %v196
    %198 = vmatmul.f32.gmra.mxu0 %v177
    %v199 = vpop.f32.mrf.mxu0
    %v200 = vadd.f32 0.0, %v199
    %201 = vdwg.mxu0
    %v202 = vadd.f32 %v162, %v197
    %v203 = vadd.f32 %v163, %v200
    %s204 = scalar_lea.vmem %s1, 64
    %v205 = vld [vmem:[%s204] sm:$0xff]
    %v206 = vld [vmem:[%s204 + $0x8] sm:$0xff]
    %207 = vrot.lane.b32.xlu0 %v50, 124
    %v208 = vpop.permute.xlu0 %207
    %209 = vrot.lane.b32.xlu0 %v51, 124
    %v210 = vpop.permute.xlu0 %209
    %v214 = vsel %vm65, %v205, 0
    %v217 = vsel %vm65, %v206, 0
    %219 = vmatpush.msra.mxu0 0.0
    %220 = vmatpush.msra.mxu0 0.0
    %221 = vmatpush.msra.mxu0 0.0
    %222 = vmatpush.msra.mxu0 0.0
    %223 = vmatpush.msra.mxu0 0.0
    %224 = vmatpush.msra.mxu0 0.0
    %225 = vmatpush.msra.mxu0 0.0
    %226 = vmatpush.msra.mxu0 0.0
    %227 = vmatpush.msra.mxu0 0.0
    %228 = vmatpush.msra.mxu0 0.0
    %229 = vmatpush.msra.mxu0 0.0
    %230 = vmatpush.msra.mxu0 0.0
    %231 = vmatpush.msra.mxu0 0.0
    %232 = vmatpush.msra.mxu0 0.0
    %233 = vmatpush.msra.mxu0 %v210
    %234 = vmatpush.msra.mxu0 %v208
    %235 = vmatmul.f32.gmra.mxu0 %v214
    %v236 = vpop.f32.mrf.mxu0
    %v237 = vadd.f32 0.0, %v236
    %238 = vmatmul.f32.gmra.mxu0 %v217
    %v239 = vpop.f32.mrf.mxu0
    %v240 = vadd.f32 0.0, %v239
    %241 = vdwg.mxu0
    %v242 = vadd.f32 %v202, %v237
    %v243 = vadd.f32 %v203, %v240
    %v244 = vlaneseq
    %v245 = vand.u32 %v244, 127
    %vm246 = vcmp.ge.s32.totalorder %v245, 0
    %vm247 = vcmp.lt.s32.totalorder %v245, 44
    %vm248 = vmand %vm246, %vm247
    %v249 = vsel %vm248, 1, 0
    %v250 = vcvt.s32.f32 %v249
    %v251 = vmax.f32 %v250, 0.0
    %vm252 = vcmp.ge.s32.totalorder %v245, 48
    %vm253 = vcmp.lt.s32.totalorder %v245, 92
    %vm254 = vmand %vm252, %vm253
    %v255 = vsel %vm254, 1, 0
    %v256 = vcvt.s32.f32 %v255
    %v257 = vmax.f32 %v251, %v256
    %v258 = vmul.f32 %v242, %v257
    %v259 = vmul.f32 %v243, %v257
    %vm260 = vcmask 752640
    %v261 = vsel %vm260, %v258, 0.0
    %262 = vadd.xlane.f32.xlu0 %v261
    %v263 = vpop.xlane.xlu0 %262
    %v264 = vsel %vm260, %v259, 0.0
    %265 = vadd.xlane.f32.xlu0 %v264
    %v266 = vpop.xlane.xlu0 %265
    %v267 = vrcp.pop 88.0
    %v268 = vmul.f32 88.0, %v267
    %v269 = vsub.f32 1.0, %v268
    %v270 = vmul.f32 %v267, %v269
    %v271 = vadd.f32 %v267, %v270
    %vm272 = vweird.f32 %v267
    %v273 = vsel %vm272, %v267, %v271
    %v274 = vmul.f32 %v263, %v273
    %v275 = vmul.f32 %v266, %v273
    %v276 = vsub.f32 %v242, %v274
    %v277 = vsub.f32 %v243, %v275
    %v278 = vmul.f32 %v276, %v276
    %v279 = vmul.f32 %v277, %v277
    %v280 = vmul.f32 %v278, %v257
    %v281 = vmul.f32 %v279, %v257
    %v282 = vsel %vm260, %v280, 0.0
    %283 = vadd.xlane.f32.xlu0 %v282
    %v284 = vpop.xlane.xlu0 %283
    %v285 = vsel %vm260, %v281, 0.0
    %286 = vadd.xlane.f32.xlu0 %v285
    %v287 = vpop.xlane.xlu0 %286
    %v288 = vmul.f32 %v284, %v273
    %v289 = vmul.f32 %v287, %v273
    %v290 = vld [vmem:[%s4] sm:$0xff]
    %v291 = vld [vmem:[%s4 + $0x8] sm:$0xff]
    %v292 = vadd.f32 %v288, 0.001
    %v293 = vadd.f32 %v289, 0.001
    %v294 = vrsqrt.pop %v292
    %v295 = vmul.f32 %v294, %v292
    %v296 = vmul.f32 %v295, %v294
    %v297 = vmul.f32 0.5, %v296
    %v298 = vsub.f32 1.5, %v297
    %v299 = vmul.f32 %v294, %v298
    %vm300 = vweird.f32 %v292
    %vm301 = vweird.f32 %v294
    %vm302 = vmor %vm300, %vm301
    %v303 = vsel %vm302, %v294, %v299
    %v304 = vrsqrt.pop %v293
    %v305 = vmul.f32 %v304, %v293
    %v306 = vmul.f32 %v305, %v304
    %v307 = vmul.f32 0.5, %v306
    %v308 = vsub.f32 1.5, %v307
    %v309 = vmul.f32 %v304, %v308
    %vm310 = vweird.f32 %v293
    %vm311 = vweird.f32 %v304
    %vm312 = vmor %vm310, %vm311
    %v313 = vsel %vm312, %v304, %v309
    %v314 = vmul.f32 %v290, %v303
    %v315 = vmul.f32 %v291, %v313
    %v316 = vmul.f32 %v274, %v314
    %v317 = vmul.f32 %v275, %v315
    %320 = vrot.lane.b32.xlu0 %v316, 1
    %v321 = vpop.permute.xlu0 %320
    %322 = vrot.lane.b32.xlu0 %v317, 1
    %v323 = vpop.permute.xlu0 %322
    %v326 = vsub.f32 %v290, %v321
    %v327 = vsub.f32 %v291, %v323
    %329 = vset.pattern.permute.xlu0 0
    %330 = vperm.xlu0 %329, %v314
    %v331 = vpop.permute.xlu0 %330
    %334 = vset.pattern.permute.xlu0 0
    %335 = vperm.xlu0 %334, %v315
    %v336 = vpop.permute.xlu0 %335
    %v338 = vmul.f32 %v242, %v331
    %v339 = vmul.f32 %v243, %v336
    %341 = vset.pattern.permute.xlu0 1
    %342 = vperm.xlu0 %341, %v326
    %v343 = vpop.permute.xlu0 %342
    %346 = vset.pattern.permute.xlu0 1
    %347 = vperm.xlu0 %346, %v327
    %v348 = vpop.permute.xlu0 %347
    %v350 = vadd.f32 %v338, %v343
    %v351 = vadd.f32 %v339, %v348
    %v352 = vmax.f32 %v350, 0.0
    %v353 = vmax.f32 %v351, 0.0
    %v354 = vld [vmem:[%s5] sm:$0xff]
    %v355 = vld [vmem:[%s5 + $0x8] sm:$0xff]
    %v356 = vld [vmem:[%s5 + $0x10] sm:$0xff]
    %v357 = vld [vmem:[%s5 + $0x18] sm:$0xff]
    %v358 = vld [vmem:[%s5 + $0x20] sm:$0xff]
    %v359 = vld [vmem:[%s5 + $0x28] sm:$0xff]
    %v360 = vld [vmem:[%s5 + $0x30] sm:$0xff]
    %v361 = vld [vmem:[%s5 + $0x38] sm:$0xff]
    %v362 = vld [vmem:[%s5 + $0x40] sm:$0xff]
    %v363 = vld [vmem:[%s5 + $0x48] sm:$0xff]
    %v364 = vld [vmem:[%s5 + $0x50] sm:$0xff]
    %v365 = vld [vmem:[%s5 + $0x58] sm:$0xf]
    %v367 = vsel %vm260, %v352, 0
    %v370 = vsel %vm260, %v353, 0
    %vm372 = vcmask 1043456
    %v374 = vsel %vm372, %v365, 0
    %376 = vmatpush.msra.mxu0 0.0
    %377 = vmatpush.msra.mxu0 0.0
    %378 = vmatpush.msra.mxu0 0.0
    %379 = vmatpush.msra.mxu0 0.0
    %380 = vmatpush.msra.mxu0 %v374
    %381 = vmatpush.msra.mxu0 %v364
    %382 = vmatpush.msra.mxu0 %v363
    %383 = vmatpush.msra.mxu0 %v362
    %384 = vmatpush.msra.mxu0 %v361
    %385 = vmatpush.msra.mxu0 %v360
    %386 = vmatpush.msra.mxu0 %v359
    %387 = vmatpush.msra.mxu0 %v358
    %388 = vmatpush.msra.mxu0 %v357
    %389 = vmatpush.msra.mxu0 %v356
    %390 = vmatpush.msra.mxu0 %v355
    %391 = vmatpush.msra.mxu0 %v354
    %392 = vmatmul.f32.gmra.mxu0 %v367
    %v393 = vpop.f32.mrf.mxu0
    %v394 = vadd.f32 0.0, %v393
    %395 = vmatmul.f32.gmra.mxu0 %v370
    %v396 = vpop.f32.mrf.mxu0
    %v397 = vadd.f32 0.0, %v396
    %398 = vdwg.mxu0
    %401 = vrot.lane.b32.xlu0 %v394, 84
    %v402 = vpop.permute.xlu0 %401
    %403 = vrot.lane.b32.xlu0 %v397, 84
    %v404 = vpop.permute.xlu0 %403
    %v407 = vmax.f32 %v394, %v402
    %v408 = vmax.f32 %v397, %v404
    %409 = vrot.lane.b32.xlu0 %v394, 44
    %v410 = vpop.permute.xlu0 %409
    %411 = vrot.lane.b32.xlu0 %v397, 44
    %v412 = vpop.permute.xlu0 %411
    %vm415 = vcmp.gt.f32.partialorder %v394, %v410
    %vm416 = vcmp.gt.f32.partialorder %v397, %v412
    %v417 = vsel %vm415, 1, 0
    %v418 = vsel %vm416, 1, 0
    %v419 = vmul.u32 %v245, 2
    %420 = vrot.lane.b32.xlu0 %v417, 84
    %v421 = vpop.permute.xlu0 %420
    %422 = vrot.lane.b32.xlu0 %v418, 84
    %v423 = vpop.permute.xlu0 %422
    %v424 = vadd.s32 %v419, %v421
    %v425 = vadd.s32 %v419, %v423
    %vm426 = vcmask 179200
    %427 = vst.msk [vmem:[#allocation5] sm:$0xff] %vm426, %v424
    %428 = vst.msk [vmem:[#allocation5 + $0x8] sm:$0xff] %vm426, %v425
    %429 = vrot.lane.b32.xlu0 %v417, 62
    %v430 = vpop.permute.xlu0 %429
    %431 = vrot.lane.b32.xlu0 %v418, 62
    %v432 = vpop.permute.xlu0 %431
    %v433 = vadd.s32 %v419, %v430
    %v434 = vadd.s32 %v419, %v432
    %s435 = scalar_lea.vmem [#allocation5], 16
    %436 = vst.msk [vmem:[%s435] sm:$0xff] %vm426, %v433
    %437 = vst.msk [vmem:[%s435 + $0x8] sm:$0xff] %vm426, %v434
    %v438 = vld [vmem:[%s2] sm:$0xff]
    %v439 = vld [vmem:[%s2 + $0x8] sm:$0xff]
    %s440 = scalar_lea.vmem %s2, 16
    %v441 = vld [vmem:[%s440] sm:$0xff]
    %v442 = vld [vmem:[%s440 + $0x8] sm:$0xff]
    %445 = vrot.lane.b32.xlu0 %v407, 127
    %v446 = vpop.permute.xlu0 %445
    %447 = vrot.lane.b32.xlu0 %v408, 127
    %v448 = vpop.permute.xlu0 %447
    %v452 = vsel %vm65, %v441, 0
    %v455 = vsel %vm65, %v442, 0
    %457 = vmatpush.msra.mxu0 0.0
    %458 = vmatpush.msra.mxu0 0.0
    %459 = vmatpush.msra.mxu0 0.0
    %460 = vmatpush.msra.mxu0 0.0
    %461 = vmatpush.msra.mxu0 0.0
    %462 = vmatpush.msra.mxu0 0.0
    %463 = vmatpush.msra.mxu0 0.0
    %464 = vmatpush.msra.mxu0 0.0
    %465 = vmatpush.msra.mxu0 0.0
    %466 = vmatpush.msra.mxu0 0.0
    %467 = vmatpush.msra.mxu0 0.0
    %468 = vmatpush.msra.mxu0 0.0
    %469 = vmatpush.msra.mxu0 0.0
    %470 = vmatpush.msra.mxu0 0.0
    %471 = vmatpush.msra.mxu0 %v448
    %472 = vmatpush.msra.mxu0 %v446
    %473 = vmatmul.f32.gmra.mxu0 %v452
    %v474 = vpop.f32.mrf.mxu0
    %v475 = vadd.f32 0.0, %v474
    %476 = vmatmul.f32.gmra.mxu0 %v455
    %v477 = vpop.f32.mrf.mxu0
    %v478 = vadd.f32 0.0, %v477
    %479 = vdwg.mxu0
    %v481 = vsel %vm65, %v438, 0
    %v484 = vsel %vm65, %v439, 0
    %486 = vmatpush.msra.mxu0 0.0
    %487 = vmatpush.msra.mxu0 0.0
    %488 = vmatpush.msra.mxu0 0.0
    %489 = vmatpush.msra.mxu0 0.0
    %490 = vmatpush.msra.mxu0 0.0
    %491 = vmatpush.msra.mxu0 0.0
    %492 = vmatpush.msra.mxu0 0.0
    %493 = vmatpush.msra.mxu0 0.0
    %494 = vmatpush.msra.mxu0 0.0
    %495 = vmatpush.msra.mxu0 0.0
    %496 = vmatpush.msra.mxu0 0.0
    %497 = vmatpush.msra.mxu0 0.0
    %498 = vmatpush.msra.mxu0 0.0
    %499 = vmatpush.msra.mxu0 0.0
    %500 = vmatpush.msra.mxu0 %v408
    %501 = vmatpush.msra.mxu0 %v407
    %502 = vmatmul.f32.gmra.mxu0 %v481
    %v503 = vpop.f32.mrf.mxu0
    %v504 = vadd.f32 %v475, %v503
    %505 = vmatmul.f32.gmra.mxu0 %v484
    %v506 = vpop.f32.mrf.mxu0
    %v507 = vadd.f32 %v478, %v506
    %508 = vdwg.mxu0
    %s509 = scalar_lea.vmem %s2, 32
    %v510 = vld [vmem:[%s509] sm:$0xff]
    %v511 = vld [vmem:[%s509 + $0x8] sm:$0xff]
    %512 = vrot.lane.b32.xlu0 %v407, 126
    %v513 = vpop.permute.xlu0 %512
    %514 = vrot.lane.b32.xlu0 %v408, 126
    %v515 = vpop.permute.xlu0 %514
    %v519 = vsel %vm65, %v510, 0
    %v522 = vsel %vm65, %v511, 0
    %524 = vmatpush.msra.mxu0 0.0
    %525 = vmatpush.msra.mxu0 0.0
    %526 = vmatpush.msra.mxu0 0.0
    %527 = vmatpush.msra.mxu0 0.0
    %528 = vmatpush.msra.mxu0 0.0
    %529 = vmatpush.msra.mxu0 0.0
    %530 = vmatpush.msra.mxu0 0.0
    %531 = vmatpush.msra.mxu0 0.0
    %532 = vmatpush.msra.mxu0 0.0
    %533 = vmatpush.msra.mxu0 0.0
    %534 = vmatpush.msra.mxu0 0.0
    %535 = vmatpush.msra.mxu0 0.0
    %536 = vmatpush.msra.mxu0 0.0
    %537 = vmatpush.msra.mxu0 0.0
    %538 = vmatpush.msra.mxu0 %v515
    %539 = vmatpush.msra.mxu0 %v513
    %540 = vmatmul.f32.gmra.mxu0 %v519
    %v541 = vpop.f32.mrf.mxu0
    %v542 = vadd.f32 0.0, %v541
    %543 = vmatmul.f32.gmra.mxu0 %v522
    %v544 = vpop.f32.mrf.mxu0
    %v545 = vadd.f32 0.0, %v544
    %546 = vdwg.mxu0
    %v547 = vadd.f32 %v504, %v542
    %v548 = vadd.f32 %v507, %v545
    %s549 = scalar_lea.vmem %s2, 48
    %v550 = vld [vmem:[%s549] sm:$0xff]
    %v551 = vld [vmem:[%s549 + $0x8] sm:$0xff]
    %552 = vrot.lane.b32.xlu0 %v407, 125
    %v553 = vpop.permute.xlu0 %552
    %554 = vrot.lane.b32.xlu0 %v408, 125
    %v555 = vpop.permute.xlu0 %554
    %v559 = vsel %vm65, %v550, 0
    %v562 = vsel %vm65, %v551, 0
    %564 = vmatpush.msra.mxu0 0.0
    %565 = vmatpush.msra.mxu0 0.0
    %566 = vmatpush.msra.mxu0 0.0
    %567 = vmatpush.msra.mxu0 0.0
    %568 = vmatpush.msra.mxu0 0.0
    %569 = vmatpush.msra.mxu0 0.0
    %570 = vmatpush.msra.mxu0 0.0
    %571 = vmatpush.msra.mxu0 0.0
    %572 = vmatpush.msra.mxu0 0.0
    %573 = vmatpush.msra.mxu0 0.0
    %574 = vmatpush.msra.mxu0 0.0
    %575 = vmatpush.msra.mxu0 0.0
    %576 = vmatpush.msra.mxu0 0.0
    %577 = vmatpush.msra.mxu0 0.0
    %578 = vmatpush.msra.mxu0 %v555
    %579 = vmatpush.msra.mxu0 %v553
    %580 = vmatmul.f32.gmra.mxu0 %v559
    %v581 = vpop.f32.mrf.mxu0
    %v582 = vadd.f32 0.0, %v581
    %583 = vmatmul.f32.gmra.mxu0 %v562
    %v584 = vpop.f32.mrf.mxu0
    %v585 = vadd.f32 0.0, %v584
    %586 = vdwg.mxu0
    %v587 = vadd.f32 %v547, %v582
    %v588 = vadd.f32 %v548, %v585
    %s589 = scalar_lea.vmem %s2, 64
    %v590 = vld [vmem:[%s589] sm:$0xff]
    %v591 = vld [vmem:[%s589 + $0x8] sm:$0xff]
    %592 = vrot.lane.b32.xlu0 %v407, 124
    %v593 = vpop.permute.xlu0 %592
    %594 = vrot.lane.b32.xlu0 %v408, 124
    %v595 = vpop.permute.xlu0 %594
    %v599 = vsel %vm65, %v590, 0
    %v602 = vsel %vm65, %v591, 0
    %604 = vmatpush.msra.mxu0 0.0
    %605 = vmatpush.msra.mxu0 0.0
    %606 = vmatpush.msra.mxu0 0.0
    %607 = vmatpush.msra.mxu0 0.0
    %608 = vmatpush.msra.mxu0 0.0
    %609 = vmatpush.msra.mxu0 0.0
    %610 = vmatpush.msra.mxu0 0.0
    %611 = vmatpush.msra.mxu0 0.0
    %612 = vmatpush.msra.mxu0 0.0
    %613 = vmatpush.msra.mxu0 0.0
    %614 = vmatpush.msra.mxu0 0.0
    %615 = vmatpush.msra.mxu0 0.0
    %616 = vmatpush.msra.mxu0 0.0
    %617 = vmatpush.msra.mxu0 0.0
    %618 = vmatpush.msra.mxu0 %v595
    %619 = vmatpush.msra.mxu0 %v593
    %620 = vmatmul.f32.gmra.mxu0 %v599
    %v621 = vpop.f32.mrf.mxu0
    %v622 = vadd.f32 0.0, %v621
    %623 = vmatmul.f32.gmra.mxu0 %v602
    %v624 = vpop.f32.mrf.mxu0
    %v625 = vadd.f32 0.0, %v624
    %626 = vdwg.mxu0
    %v627 = vadd.f32 %v587, %v622
    %v628 = vadd.f32 %v588, %v625
    %vm629 = vcmp.lt.s32.totalorder %v245, 18
    %vm630 = vmand %vm246, %vm629
    %v631 = vsel %vm630, 1, 0
    %v632 = vcvt.s32.f32 %v631
    %v633 = vmax.f32 %v632, 0.0
    %vm634 = vcmp.ge.s32.totalorder %v245, 22
    %vm635 = vcmp.lt.s32.totalorder %v245, 40
    %vm636 = vmand %vm634, %vm635
    %v637 = vsel %vm636, 1, 0
    %v638 = vcvt.s32.f32 %v637
    %v639 = vmax.f32 %v633, %v638
    %v640 = vmul.f32 %v627, %v639
    %v641 = vmul.f32 %v628, %v639
    %vm642 = vcmask 326656
    %v643 = vsel %vm642, %v640, 0.0
    %644 = vadd.xlane.f32.xlu0 %v643
    %v645 = vpop.xlane.xlu0 %644
    %v646 = vsel %vm642, %v641, 0.0
    %647 = vadd.xlane.f32.xlu0 %v646
    %v648 = vpop.xlane.xlu0 %647
    %v649 = vrcp.pop 36.0
    %v650 = vmul.f32 36.0, %v649
    %v651 = vsub.f32 1.0, %v650
    %v652 = vmul.f32 %v649, %v651
    %v653 = vadd.f32 %v649, %v652
    %vm654 = vweird.f32 %v649
    %v655 = vsel %vm654, %v649, %v653
    %v656 = vmul.f32 %v645, %v655
    %v657 = vmul.f32 %v648, %v655
    %v658 = vsub.f32 %v627, %v656
    %v659 = vsub.f32 %v628, %v657
    %v660 = vmul.f32 %v658, %v658
    %v661 = vmul.f32 %v659, %v659
    %v662 = vmul.f32 %v660, %v639
    %v663 = vmul.f32 %v661, %v639
    %v664 = vsel %vm642, %v662, 0.0
    %665 = vadd.xlane.f32.xlu0 %v664
    %v666 = vpop.xlane.xlu0 %665
    %v667 = vsel %vm642, %v663, 0.0
    %668 = vadd.xlane.f32.xlu0 %v667
    %v669 = vpop.xlane.xlu0 %668
    %v670 = vmul.f32 %v666, %v655
    %v671 = vmul.f32 %v669, %v655
    %v672 = vld [vmem:[%s4] sm:$0xff]
    %v673 = vld [vmem:[%s4 + $0x8] sm:$0xff]
    %v674 = vadd.f32 %v670, 0.001
    %v675 = vadd.f32 %v671, 0.001
    %v676 = vrsqrt.pop %v674
    %v677 = vmul.f32 %v676, %v674
    %v678 = vmul.f32 %v677, %v676
    %v679 = vmul.f32 0.5, %v678
    %v680 = vsub.f32 1.5, %v679
    %v681 = vmul.f32 %v676, %v680
    %vm682 = vweird.f32 %v674
    %vm683 = vweird.f32 %v676
    %vm684 = vmor %vm682, %vm683
    %v685 = vsel %vm684, %v676, %v681
    %v686 = vrsqrt.pop %v675
    %v687 = vmul.f32 %v686, %v675
    %v688 = vmul.f32 %v687, %v686
    %v689 = vmul.f32 0.5, %v688
    %v690 = vsub.f32 1.5, %v689
    %v691 = vmul.f32 %v686, %v690
    %vm692 = vweird.f32 %v675
    %vm693 = vweird.f32 %v686
    %vm694 = vmor %vm692, %vm693
    %v695 = vsel %vm694, %v686, %v691
    %v696 = vmul.f32 %v672, %v685
    %v697 = vmul.f32 %v673, %v695
    %v698 = vmul.f32 %v656, %v696
    %v699 = vmul.f32 %v657, %v697
    %702 = vrot.lane.b32.xlu0 %v698, 1
    %v703 = vpop.permute.xlu0 %702
    %704 = vrot.lane.b32.xlu0 %v699, 1
    %v705 = vpop.permute.xlu0 %704
    %v708 = vsub.f32 %v672, %v703
    %v709 = vsub.f32 %v673, %v705
    %711 = vset.pattern.permute.xlu0 2
    %712 = vperm.xlu0 %711, %v696
    %v713 = vpop.permute.xlu0 %712
    %716 = vset.pattern.permute.xlu0 2
    %717 = vperm.xlu0 %716, %v697
    %v718 = vpop.permute.xlu0 %717
    %v720 = vmul.f32 %v627, %v713
    %v721 = vmul.f32 %v628, %v718
    %723 = vset.pattern.permute.xlu0 3
    %724 = vperm.xlu0 %723, %v708
    %v725 = vpop.permute.xlu0 %724
    %728 = vset.pattern.permute.xlu0 3
    %729 = vperm.xlu0 %728, %v709
    %v730 = vpop.permute.xlu0 %729
    %v732 = vadd.f32 %v720, %v725
    %v733 = vadd.f32 %v721, %v730
    %v734 = vmax.f32 %v732, 0.0
    %v735 = vmax.f32 %v733, 0.0
    %v736 = vld [vmem:[%s6] sm:$0xff]
    %v737 = vld [vmem:[%s6 + $0x8] sm:$0xff]
    %v738 = vld [vmem:[%s6 + $0x10] sm:$0xff]
    %v739 = vld [vmem:[%s6 + $0x18] sm:$0xff]
    %v740 = vld [vmem:[%s6 + $0x20] sm:$0xff]
    %v742 = vsel %vm642, %v734, 0
    %v745 = vsel %vm642, %v735, 0
    %747 = vmatpush.msra.mxu0 0.0
    %748 = vmatpush.msra.mxu0 0.0
    %749 = vmatpush.msra.mxu0 0.0
    %750 = vmatpush.msra.mxu0 0.0
    %751 = vmatpush.msra.mxu0 0.0
    %752 = vmatpush.msra.mxu0 0.0
    %753 = vmatpush.msra.mxu0 0.0
    %754 = vmatpush.msra.mxu0 0.0
    %755 = vmatpush.msra.mxu0 0.0
    %756 = vmatpush.msra.mxu0 0.0
    %757 = vmatpush.msra.mxu0 0.0
    %758 = vmatpush.msra.mxu0 %v740
    %759 = vmatpush.msra.mxu0 %v739
    %760 = vmatpush.msra.mxu0 %v738
    %761 = vmatpush.msra.mxu0 %v737
    %762 = vmatpush.msra.mxu0 %v736
    %763 = vmatmul.f32.gmra.mxu0 %v742
    %v764 = vpop.f32.mrf.mxu0
    %v765 = vadd.f32 0.0, %v764
    %766 = vmatmul.f32.gmra.mxu0 %v745
    %v767 = vpop.f32.mrf.mxu0
    %v768 = vadd.f32 0.0, %v767
    %769 = vdwg.mxu0
    %772 = vrot.lane.b32.xlu0 %v765, 110
    %v773 = vpop.permute.xlu0 %772
    %774 = vrot.lane.b32.xlu0 %v768, 110
    %v775 = vpop.permute.xlu0 %774
    %v778 = vmax.f32 %v765, %v773
    %v779 = vmax.f32 %v768, %v775
    %780 = vrot.lane.b32.xlu0 %v765, 18
    %v781 = vpop.permute.xlu0 %780
    %782 = vrot.lane.b32.xlu0 %v768, 18
    %v783 = vpop.permute.xlu0 %782
    %vm786 = vcmp.gt.f32.partialorder %v765, %v781
    %vm787 = vcmp.gt.f32.partialorder %v768, %v783
    %v788 = vsel %vm786, 1, 0
    %v789 = vsel %vm787, 1, 0
    %790 = vrot.lane.b32.xlu0 %v788, 110
    %v791 = vpop.permute.xlu0 %790
    %792 = vrot.lane.b32.xlu0 %v789, 110
    %v793 = vpop.permute.xlu0 %792
    %v794 = vadd.s32 %v419, %v791
    %v795 = vadd.s32 %v419, %v793
    %vm796 = vcmask 72704
    %797 = vst.msk [vmem:[%s10] sm:$0xff] %vm796, %v794
    %798 = vst.msk [vmem:[%s10 + $0x8] sm:$0xff] %vm796, %v795
    %799 = vrot.lane.b32.xlu0 %v788, 101
    %v800 = vpop.permute.xlu0 %799
    %801 = vrot.lane.b32.xlu0 %v789, 101
    %v802 = vpop.permute.xlu0 %801
    %v803 = vadd.s32 %v419, %v800
    %v804 = vadd.s32 %v419, %v802
    %s805 = scalar_lea.vmem %s10, 16
    %806 = vst.msk [vmem:[%s805] sm:$0xff] %vm796, %v803
    %807 = vst.msk [vmem:[%s805 + $0x8] sm:$0xff] %vm796, %v804
    %v808 = vld [vmem:[#allocation2] sm:$0xff]
    %v809 = vld [vmem:[#allocation2 + $0x8] sm:$0xff]
    %s810 = scalar_lea.vmem [#allocation2], 16
    %v811 = vld [vmem:[%s810] sm:$0xff]
    %v812 = vld [vmem:[%s810 + $0x8] sm:$0xff]
    %815 = vrot.lane.b32.xlu0 %v778, 127
    %v816 = vpop.permute.xlu0 %815
    %817 = vrot.lane.b32.xlu0 %v779, 127
    %v818 = vpop.permute.xlu0 %817
    %v822 = vsel %vm65, %v811, 0
    %v825 = vsel %vm65, %v812, 0
    %827 = vmatpush.msra.mxu0 0.0
    %828 = vmatpush.msra.mxu0 0.0
    %829 = vmatpush.msra.mxu0 0.0
    %830 = vmatpush.msra.mxu0 0.0
    %831 = vmatpush.msra.mxu0 0.0
    %832 = vmatpush.msra.mxu0 0.0
    %833 = vmatpush.msra.mxu0 0.0
    %834 = vmatpush.msra.mxu0 0.0
    %835 = vmatpush.msra.mxu0 0.0
    %836 = vmatpush.msra.mxu0 0.0
    %837 = vmatpush.msra.mxu0 0.0
    %838 = vmatpush.msra.mxu0 0.0
    %839 = vmatpush.msra.mxu0 0.0
    %840 = vmatpush.msra.mxu0 0.0
    %841 = vmatpush.msra.mxu0 %v818
    %842 = vmatpush.msra.mxu0 %v816
    %843 = vmatmul.f32.gmra.mxu0 %v822
    %v844 = vpop.f32.mrf.mxu0
    %v845 = vadd.f32 0.0, %v844
    %846 = vmatmul.f32.gmra.mxu0 %v825
    %v847 = vpop.f32.mrf.mxu0
    %v848 = vadd.f32 0.0, %v847
    %849 = vdwg.mxu0
    %v851 = vsel %vm65, %v808, 0
    %v854 = vsel %vm65, %v809, 0
    %856 = vmatpush.msra.mxu0 0.0
    %857 = vmatpush.msra.mxu0 0.0
    %858 = vmatpush.msra.mxu0 0.0
    %859 = vmatpush.msra.mxu0 0.0
    %860 = vmatpush.msra.mxu0 0.0
    %861 = vmatpush.msra.mxu0 0.0
    %862 = vmatpush.msra.mxu0 0.0
    %863 = vmatpush.msra.mxu0 0.0
    %864 = vmatpush.msra.mxu0 0.0
    %865 = vmatpush.msra.mxu0 0.0
    %866 = vmatpush.msra.mxu0 0.0
    %867 = vmatpush.msra.mxu0 0.0
    %868 = vmatpush.msra.mxu0 0.0
    %869 = vmatpush.msra.mxu0 0.0
    %870 = vmatpush.msra.mxu0 %v779
    %871 = vmatpush.msra.mxu0 %v778
    %872 = vmatmul.f32.gmra.mxu0 %v851
    %v873 = vpop.f32.mrf.mxu0
    %v874 = vadd.f32 %v845, %v873
    %875 = vmatmul.f32.gmra.mxu0 %v854
    %v876 = vpop.f32.mrf.mxu0
    %v877 = vadd.f32 %v848, %v876
    %878 = vdwg.mxu0
    %s879 = scalar_lea.vmem [#allocation2], 32
    %v880 = vld [vmem:[%s879] sm:$0xff]
    %v881 = vld [vmem:[%s879 + $0x8] sm:$0xff]
    %882 = vrot.lane.b32.xlu0 %v778, 126
    %v883 = vpop.permute.xlu0 %882
    %884 = vrot.lane.b32.xlu0 %v779, 126
    %v885 = vpop.permute.xlu0 %884
    %v889 = vsel %vm65, %v880, 0
    %v892 = vsel %vm65, %v881, 0
    %894 = vmatpush.msra.mxu0 0.0
    %895 = vmatpush.msra.mxu0 0.0
    %896 = vmatpush.msra.mxu0 0.0
    %897 = vmatpush.msra.mxu0 0.0
    %898 = vmatpush.msra.mxu0 0.0
    %899 = vmatpush.msra.mxu0 0.0
    %900 = vmatpush.msra.mxu0 0.0
    %901 = vmatpush.msra.mxu0 0.0
    %902 = vmatpush.msra.mxu0 0.0
    %903 = vmatpush.msra.mxu0 0.0
    %904 = vmatpush.msra.mxu0 0.0
    %905 = vmatpush.msra.mxu0 0.0
    %906 = vmatpush.msra.mxu0 0.0
    %907 = vmatpush.msra.mxu0 0.0
    %908 = vmatpush.msra.mxu0 %v885
    %909 = vmatpush.msra.mxu0 %v883
    %910 = vmatmul.f32.gmra.mxu0 %v889
    %v911 = vpop.f32.mrf.mxu0
    %v912 = vadd.f32 0.0, %v911
    %913 = vmatmul.f32.gmra.mxu0 %v892
    %v914 = vpop.f32.mrf.mxu0
    %v915 = vadd.f32 0.0, %v914
    %916 = vdwg.mxu0
    %v917 = vadd.f32 %v874, %v912
    %v918 = vadd.f32 %v877, %v915
    %s919 = scalar_lea.vmem [#allocation2], 48
    %v920 = vld [vmem:[%s919] sm:$0xff]
    %v921 = vld [vmem:[%s919 + $0x8] sm:$0xff]
    %922 = vrot.lane.b32.xlu0 %v778, 125
    %v923 = vpop.permute.xlu0 %922
    %924 = vrot.lane.b32.xlu0 %v779, 125
    %v925 = vpop.permute.xlu0 %924
    %v929 = vsel %vm65, %v920, 0
    %v932 = vsel %vm65, %v921, 0
    %934 = vmatpush.msra.mxu0 0.0
    %935 = vmatpush.msra.mxu0 0.0
    %936 = vmatpush.msra.mxu0 0.0
    %937 = vmatpush.msra.mxu0 0.0
    %938 = vmatpush.msra.mxu0 0.0
    %939 = vmatpush.msra.mxu0 0.0
    %940 = vmatpush.msra.mxu0 0.0
    %941 = vmatpush.msra.mxu0 0.0
    %942 = vmatpush.msra.mxu0 0.0
    %943 = vmatpush.msra.mxu0 0.0
    %944 = vmatpush.msra.mxu0 0.0
    %945 = vmatpush.msra.mxu0 0.0
    %946 = vmatpush.msra.mxu0 0.0
    %947 = vmatpush.msra.mxu0 0.0
    %948 = vmatpush.msra.mxu0 %v925
    %949 = vmatpush.msra.mxu0 %v923
    %950 = vmatmul.f32.gmra.mxu0 %v929
    %v951 = vpop.f32.mrf.mxu0
    %v952 = vadd.f32 0.0, %v951
    %953 = vmatmul.f32.gmra.mxu0 %v932
    %v954 = vpop.f32.mrf.mxu0
    %v955 = vadd.f32 0.0, %v954
    %956 = vdwg.mxu0
    %v957 = vadd.f32 %v917, %v952
    %v958 = vadd.f32 %v918, %v955
    %s959 = scalar_lea.vmem [#allocation2], 64
    %v960 = vld [vmem:[%s959] sm:$0xff]
    %v961 = vld [vmem:[%s959 + $0x8] sm:$0xff]
    %962 = vrot.lane.b32.xlu0 %v778, 124
    %v963 = vpop.permute.xlu0 %962
    %964 = vrot.lane.b32.xlu0 %v779, 124
    %v965 = vpop.permute.xlu0 %964
    %v969 = vsel %vm65, %v960, 0
    %v972 = vsel %vm65, %v961, 0
    %974 = vmatpush.msra.mxu0 0.0
    %975 = vmatpush.msra.mxu0 0.0
    %976 = vmatpush.msra.mxu0 0.0
    %977 = vmatpush.msra.mxu0 0.0
    %978 = vmatpush.msra.mxu0 0.0
    %979 = vmatpush.msra.mxu0 0.0
    %980 = vmatpush.msra.mxu0 0.0
    %981 = vmatpush.msra.mxu0 0.0
    %982 = vmatpush.msra.mxu0 0.0
    %983 = vmatpush.msra.mxu0 0.0
    %984 = vmatpush.msra.mxu0 0.0
    %985 = vmatpush.msra.mxu0 0.0
    %986 = vmatpush.msra.mxu0 0.0
    %987 = vmatpush.msra.mxu0 0.0
    %988 = vmatpush.msra.mxu0 %v965
    %989 = vmatpush.msra.mxu0 %v963
    %990 = vmatmul.f32.gmra.mxu0 %v969
    %v991 = vpop.f32.mrf.mxu0
    %v992 = vadd.f32 0.0, %v991
    %993 = vmatmul.f32.gmra.mxu0 %v972
    %v994 = vpop.f32.mrf.mxu0
    %v995 = vadd.f32 0.0, %v994
    %996 = vdwg.mxu0
    %v997 = vadd.f32 %v957, %v992
    %v998 = vadd.f32 %v958, %v995
    %vm999 = vcmp.lt.s32.totalorder %v245, 5
    %vm1000 = vmand %vm246, %vm999
    %v1001 = vsel %vm1000, 1, 0
    %v1002 = vcvt.s32.f32 %v1001
    %v1003 = vmax.f32 %v1002, 0.0
    %vm1004 = vcmp.ge.s32.totalorder %v245, 9
    %vm1005 = vcmp.lt.s32.totalorder %v245, 14
    %vm1006 = vmand %vm1004, %vm1005
    %v1007 = vsel %vm1006, 1, 0
    %v1008 = vcvt.s32.f32 %v1007
    %v1009 = vmax.f32 %v1003, %v1008
    %v1010 = vmul.f32 %v997, %v1009
    %v1011 = vmul.f32 %v998, %v1009
    %vm1012 = vcmask 113664
    %v1013 = vsel %vm1012, %v1010, 0.0
    %1014 = vadd.xlane.f32.xlu0 %v1013
    %v1015 = vpop.xlane.xlu0 %1014
    %v1016 = vsel %vm1012, %v1011, 0.0
    %1017 = vadd.xlane.f32.xlu0 %v1016
    %v1018 = vpop.xlane.xlu0 %1017
    %v1019 = vrcp.pop 10.0
    %v1020 = vmul.f32 10.0, %v1019
    %v1021 = vsub.f32 1.0, %v1020
    %v1022 = vmul.f32 %v1019, %v1021
    %v1023 = vadd.f32 %v1019, %v1022
    %vm1024 = vweird.f32 %v1019
    %v1025 = vsel %vm1024, %v1019, %v1023
    %v1026 = vmul.f32 %v1015, %v1025
    %v1027 = vmul.f32 %v1018, %v1025
    %v1028 = vsub.f32 %v997, %v1026
    %v1029 = vsub.f32 %v998, %v1027
    %v1030 = vmul.f32 %v1028, %v1028
    %v1031 = vmul.f32 %v1029, %v1029
    %v1032 = vmul.f32 %v1030, %v1009
    %v1033 = vmul.f32 %v1031, %v1009
    %v1034 = vsel %vm1012, %v1032, 0.0
    %1035 = vadd.xlane.f32.xlu0 %v1034
    %v1036 = vpop.xlane.xlu0 %1035
    %v1037 = vsel %vm1012, %v1033, 0.0
    %1038 = vadd.xlane.f32.xlu0 %v1037
    %v1039 = vpop.xlane.xlu0 %1038
    %v1040 = vmul.f32 %v1036, %v1025
    %v1041 = vmul.f32 %v1039, %v1025
    %v1042 = vld [vmem:[%s4] sm:$0xff]
    %v1043 = vld [vmem:[%s4 + $0x8] sm:$0xff]
    %v1044 = vadd.f32 %v1040, 0.001
    %v1045 = vadd.f32 %v1041, 0.001
    %v1046 = vrsqrt.pop %v1044
    %v1047 = vmul.f32 %v1046, %v1044
    %v1048 = vmul.f32 %v1047, %v1046
    %v1049 = vmul.f32 0.5, %v1048
    %v1050 = vsub.f32 1.5, %v1049
    %v1051 = vmul.f32 %v1046, %v1050
    %vm1052 = vweird.f32 %v1044
    %vm1053 = vweird.f32 %v1046
    %vm1054 = vmor %vm1052, %vm1053
    %v1055 = vsel %vm1054, %v1046, %v1051
    %v1056 = vrsqrt.pop %v1045
    %v1057 = vmul.f32 %v1056, %v1045
    %v1058 = vmul.f32 %v1057, %v1056
    %v1059 = vmul.f32 0.5, %v1058
    %v1060 = vsub.f32 1.5, %v1059
    %v1061 = vmul.f32 %v1056, %v1060
    %vm1062 = vweird.f32 %v1045
    %vm1063 = vweird.f32 %v1056
    %vm1064 = vmor %vm1062, %vm1063
    %v1065 = vsel %vm1064, %v1056, %v1061
    %v1066 = vmul.f32 %v1042, %v1055
    %v1067 = vmul.f32 %v1043, %v1065
    %v1068 = vmul.f32 %v1026, %v1066
    %v1069 = vmul.f32 %v1027, %v1067
    %1072 = vrot.lane.b32.xlu0 %v1068, 1
    %v1073 = vpop.permute.xlu0 %1072
    %1074 = vrot.lane.b32.xlu0 %v1069, 1
    %v1075 = vpop.permute.xlu0 %1074
    %v1078 = vsub.f32 %v1042, %v1073
    %v1079 = vsub.f32 %v1043, %v1075
    %1081 = vset.pattern.permute.xlu0 4
    %1082 = vperm.xlu0 %1081, %v1066
    %v1083 = vpop.permute.xlu0 %1082
    %1086 = vset.pattern.permute.xlu0 4
    %1087 = vperm.xlu0 %1086, %v1067
    %v1088 = vpop.permute.xlu0 %1087
    %v1090 = vmul.f32 %v997, %v1083
    %v1091 = vmul.f32 %v998, %v1088
    %1093 = vset.pattern.permute.xlu0 5
    %1094 = vperm.xlu0 %1093, %v1078
    %v1095 = vpop.permute.xlu0 %1094
    %1098 = vset.pattern.permute.xlu0 5
    %1099 = vperm.xlu0 %1098, %v1079
    %v1100 = vpop.permute.xlu0 %1099
    %v1102 = vadd.f32 %v1090, %v1095
    %v1103 = vadd.f32 %v1091, %v1100
    %v1104 = vmax.f32 %v1102, 0.0
    %v1105 = vmax.f32 %v1103, 0.0
    %v1106 = vld [vmem:[%s7] sm:$0xff]
    %v1107 = vld [vmem:[%s7 + $0x8] sm:$0x3f]
    %v1109 = vsel %vm1012, %v1104, 0
    %v1112 = vsel %vm1012, %v1105, 0
    %vm1114 = vcmask 1045504
    %v1116 = vsel %vm1114, %v1107, 0
    %1118 = vmatpush.msra.mxu0 0.0
    %1119 = vmatpush.msra.mxu0 0.0
    %1120 = vmatpush.msra.mxu0 0.0
    %1121 = vmatpush.msra.mxu0 0.0
    %1122 = vmatpush.msra.mxu0 0.0
    %1123 = vmatpush.msra.mxu0 0.0
    %1124 = vmatpush.msra.mxu0 0.0
    %1125 = vmatpush.msra.mxu0 0.0
    %1126 = vmatpush.msra.mxu0 0.0
    %1127 = vmatpush.msra.mxu0 0.0
    %1128 = vmatpush.msra.mxu0 0.0
    %1129 = vmatpush.msra.mxu0 0.0
    %1130 = vmatpush.msra.mxu0 0.0
    %1131 = vmatpush.msra.mxu0 0.0
    %1132 = vmatpush.msra.mxu0 %v1116
    %1133 = vmatpush.msra.mxu0 %v1106
    %1134 = vmatmul.f32.gmra.mxu0 %v1109
    %v1135 = vpop.f32.mrf.mxu0
    %v1136 = vadd.f32 0.0, %v1135
    %1137 = vmatmul.f32.gmra.mxu0 %v1112
    %v1138 = vpop.f32.mrf.mxu0
    %v1139 = vadd.f32 0.0, %v1138
    %1140 = vdwg.mxu0
    %1143 = vrot.lane.b32.xlu0 %v1136, 124
    %v1144 = vpop.permute.xlu0 %1143
    %1145 = vrot.lane.b32.xlu0 %v1139, 124
    %v1146 = vpop.permute.xlu0 %1145
    %v1149 = vmax.f32 %v1136, %v1144
    %v1150 = vmax.f32 %v1139, %v1146
    %1151 = vrot.lane.b32.xlu0 %v1136, 4
    %v1152 = vpop.permute.xlu0 %1151
    %1153 = vrot.lane.b32.xlu0 %v1139, 4
    %v1154 = vpop.permute.xlu0 %1153
    %vm1157 = vcmp.gt.f32.partialorder %v1136, %v1152
    %vm1158 = vcmp.gt.f32.partialorder %v1139, %v1154
    %v1159 = vsel %vm1157, 1, 0
    %v1160 = vsel %vm1158, 1, 0
    %1161 = vrot.lane.b32.xlu0 %v1159, 124
    %v1162 = vpop.permute.xlu0 %1161
    %1163 = vrot.lane.b32.xlu0 %v1160, 124
    %v1164 = vpop.permute.xlu0 %1163
    %v1165 = vadd.s32 %v419, %v1162
    %v1166 = vadd.s32 %v419, %v1164
    %vm1167 = vcmask 15360
    %1168 = vst.msk [vmem:[%s11] sm:$0xff] %vm1167, %v1165
    %1169 = vst.msk [vmem:[%s11 + $0x8] sm:$0xff] %vm1167, %v1166
    %1170 = vst.msk [vmem:[%s8] sm:$0xff] %vm1167, %v1149
    %1171 = vst.msk [vmem:[%s8 + $0x8] sm:$0xff] %vm1167, %v1150
    %1172 = vrot.lane.b32.xlu0 %v1159, 122
    %v1173 = vpop.permute.xlu0 %1172
    %1174 = vrot.lane.b32.xlu0 %v1160, 122
    %v1175 = vpop.permute.xlu0 %1174
    %v1176 = vadd.s32 %v419, %v1173
    %v1177 = vadd.s32 %v419, %v1175
    %s1178 = scalar_lea.vmem %s11, 16
    %1179 = vst.msk [vmem:[%s1178] sm:$0xff] %vm1167, %v1176
    %1180 = vst.msk [vmem:[%s1178 + $0x8] sm:$0xff] %vm1167, %v1177
    %1183 = vrot.lane.b32.xlu0 %v1149, 126
    %v1184 = vpop.permute.xlu0 %1183
    %1185 = vrot.lane.b32.xlu0 %v1150, 126
    %v1186 = vpop.permute.xlu0 %1185
    %s1189 = scalar_lea.vmem %s8, 16
    %1190 = vst.msk [vmem:[%s1189] sm:$0xff] %vm1167, %v1184
    %1191 = vst.msk [vmem:[%s1189 + $0x8] sm:$0xff] %vm1167, %v1186
    // Predicated region
    $region38: #{tpu_custom_call.1} parent=1 // pred_check
      _
    $region39: #{tpu_custom_call.1} parent=1 // pred_check_branch
      %1193 = sbr.rel (0) target = $region41
    $region40: #{tpu_custom_call.1} parent=1 // pred_region
      _
    $region41: #{tpu_custom_call.1} parent=1 // pred_fallthru
      _
    // Predicated region
    $region42: #{tpu_custom_call.1} parent=1 // pred_check
      _
    $region43: #{tpu_custom_call.1} parent=1 // pred_check_branch
      %1195 = sbr.rel (0) target = $region45
    $region44: #{tpu_custom_call.1} parent=1 // pred_region
      %1197 = vsyncadd [#allocation4], 0
      %s1198 = sshll.u32 [#allocation5], 4
      %s1199 = int_to_ptr.vmem [resolvable:$true] %s1198
      %s1200 = sshll.u32 %s9, 4
      %s1201 = int_to_ptr.hbm [resolvable:$true] %s1200
      %1206 = dma.vmem_to_hbm [thread:$0]  %s1199, 512, %s1201, [#allocation4], 128, 128, 8
    $region45: #{tpu_custom_call.1} parent=1 // pred_fallthru
      _
    // Predicated region
    $region46: #{tpu_custom_call.1} parent=1 // pred_check
      _
    $region47: #{tpu_custom_call.1} parent=1 // pred_check_branch
      %1208 = sbr.rel (0) target = $region49
    $region48: #{tpu_custom_call.1} parent=1 // pred_region
      _
    $region49: #{tpu_custom_call.1} parent=1 // pred_fallthru
      _
    // Predicated region
    $region50: #{tpu_custom_call.1} parent=1 // pred_check
      _
    $region51: #{tpu_custom_call.1} parent=1 // pred_check_branch
      %1210 = sbr.rel (0) target = $region53
    $region52: #{tpu_custom_call.1} parent=1 // pred_region
      _
    $region53: #{tpu_custom_call.1} parent=1 // pred_fallthru
      _
    // Predicated region
    $region54: #{tpu_custom_call.1} parent=1 // pred_check
      _
    $region55: #{tpu_custom_call.1} parent=1 // pred_check_branch
      %1212 = sbr.rel (0) target = $region57
    $region56: #{tpu_custom_call.1} parent=1 // pred_region
      _
    $region57: #{tpu_custom_call.1} parent=1 // pred_fallthru
      _
    // Predicated region
    $region58: #{tpu_custom_call.1} parent=1 // pred_check
      _
    $region59: #{tpu_custom_call.1} parent=1 // pred_check_branch
      %1214 = sbr.rel (0) target = $region61
    $region60: #{tpu_custom_call.1} parent=1 // pred_region
      %1216 = dma.done [#allocation4], 512
    $region61: #{tpu_custom_call.1} parent=1 // pred_fallthru
      _
    // Predicated region
    $region62: #{tpu_custom_call.1} parent=1 // pred_check
      _
    $region63: #{tpu_custom_call.1} parent=1 // pred_check_branch
      %1218 = sbr.rel (0) target = $region65
    $region64: #{tpu_custom_call.1} parent=1 // pred_region
      _
    $region65: #{tpu_custom_call.1} parent=1 // pred_fallthru
      _
    // Predicated region
    $region66: #{tpu_custom_call.1} parent=1 // pred_check
      _
    $region67: #{tpu_custom_call.1} parent=1 // pred_check_branch
      %1220 = sbr.rel (0) target = $region69
    $region68: #{tpu_custom_call.1} parent=1 // pred_region
      _
    $region69: #{tpu_custom_call.1} parent=1 // pred_fallthru
      _
    %1221 = vsyncpa [#allocation3], 1
    %1222 = vsyncpa [#allocation4], 1

</llo_original>
